<compile_context>
chip_gen: v5e
topology: v5e:2x2
jax: 0.10.0
libtpu: 0.0.40
codegen_flags: <defaults>
</compile_context>

<pallas_src>
import math

import jax
import jax.numpy as jnp
from jax.experimental import pallas as pl
from jax.experimental.pallas import tpu as pltpu

# ---------------- config ----------------
BATCH = 2
SEQ = 8
VOCAB = 64
VPAD = 128            # vocab padded to a lane-dense 128-wide slab
N_EMBD = 32
N_LAYER = 2
N_HEAD = 4
HEAD_DIM = N_EMBD // N_HEAD
LN_EPS = 1e-5
INV_SQRT_DH = 1.0 / math.sqrt(HEAD_DIM)
GELU_C = math.sqrt(2.0 / math.pi)
BT = BATCH * SEQ
NEG_INF = -1e9


# ---------------- in-kernel helpers (traced inside the fused kernel) ----------------
def _ln(x, g, b):
    """LayerNorm over last dim, f32 statistics. g,b are (1, E)."""
    mu = jnp.mean(x, axis=-1, keepdims=True)
    var = jnp.mean((x - mu) ** 2, axis=-1, keepdims=True)
    return (x - mu) * jax.lax.rsqrt(var + LN_EPS) * g + b


def _mm(x, w, b):
    """bf16 MXU matmul with f32 accumulation, f32 bias add."""
    y = jnp.dot(x.astype(jnp.bfloat16), w.astype(jnp.bfloat16),
                preferred_element_type=jnp.float32)
    return y + b


def _gelu_new(x):
    """GPT-2 'gelu_new' (tanh approximation), f32 elementwise (EUP tanh)."""
    return 0.5 * x * (1.0 + jnp.tanh(GELU_C * (x + 0.044715 * x * x * x)))


# ---------------- fused whole-model kernel ----------------
def _tgpt2_kernel(
    h0_ref,                                              # (BT, E)   embedded input
    ln1g_ref, ln1b_ref,                                  # (1,1,E)   per-layer
    attnw_ref, attnb_ref,                                # (1,E,3E), (1,1,3E)
    projw_ref, projb_ref,                                # (1,E,E),  (1,1,E)
    ln2g_ref, ln2b_ref,                                  # (1,1,E)
    fcw_ref, fcb_ref,                                    # (1,E,4E), (1,1,4E)
    mpw_ref, mpb_ref,                                    # (1,4E,E), (1,1,E)
    lnfg_ref, lnfb_ref,                                  # (1,E)     shared
    wte_ref,                                             # (VPAD, E) shared (zero-padded rows)
    mask_ref,                                            # (1,T,T)   additive causal mask
    tgt_ref,                                             # (BT, 1)   int32, -1 = masked position
    logits_ref,                                          # out (BT, VPAD)
    loss_ref,                                            # out (1, 1)
    h_scr,                                               # scratch (BT, E) f32 residual stream
):
    l = pl.program_id(0)

    @pl.when(l == 0)
    def _():
        h_scr[...] = h0_ref[...]

    h = h_scr[...]                                        # (BT, E) f32

    # ---------------- attention sub-block ----------------
    ln1 = _ln(h, ln1g_ref[0], ln1b_ref[0])
    qkv = _mm(ln1, attnw_ref[0], attnb_ref[0])            # (BT, 3E) f32
    qkv_b = qkv.astype(jnp.bfloat16)                      # single cast, sliced per head
    mask = mask_ref[...]                                  # (1, T, T), broadcasts over batch

    heads = []
    for hh in range(N_HEAD):                              # static unroll; all in one grid step
        q = qkv_b[:, hh * HEAD_DIM:(hh + 1) * HEAD_DIM].reshape(BATCH, SEQ, HEAD_DIM)
        k = qkv_b[:, N_EMBD + hh * HEAD_DIM:
                   N_EMBD + (hh + 1) * HEAD_DIM].reshape(BATCH, SEQ, HEAD_DIM)
        v = qkv_b[:, 2 * N_EMBD + hh * HEAD_DIM:
                   2 * N_EMBD + (hh + 1) * HEAD_DIM].reshape(BATCH, SEQ, HEAD_DIM)
        # batched over batch, contract head dim directly (no explicit k.T)
        s = jnp.einsum("bqd,bkd->bqk", q, k,
                       preferred_element_type=jnp.float32)
        s = s * INV_SQRT_DH + mask                        # scale + causal mask in one pass
        m = jnp.max(s, axis=-1, keepdims=True)
        e = jnp.exp(s - m)
        p = e * pl.reciprocal(jnp.sum(e, axis=-1, keepdims=True), approx=True)
        o = jnp.einsum("bqk,bkd->bqd", p.astype(jnp.bfloat16), v,
                       preferred_element_type=jnp.float32)
        heads.append(o.reshape(BT, HEAD_DIM))
    attn = jnp.concatenate(heads, axis=-1)                # (BT, E)

    h = h + _mm(attn, projw_ref[0], projb_ref[0])         # residual
    # TODO(synk): attention / residual / embedding dropout are identity (eval mode).

    # ---------------- MLP sub-block ----------------
    ln2 = _ln(h, ln2g_ref[0], ln2b_ref[0])
    ff = _gelu_new(_mm(ln2, fcw_ref[0], fcb_ref[0]))      # (BT, 4E) -> lane-dense 128
    h = h + _mm(ff, mpw_ref[0], mpb_ref[0])               # residual

    h_scr[...] = h

    # ---------------- final LN + tied LM head + shifted CE (last layer only) ----------------
    @pl.when(l == pl.num_programs(0) - 1)
    def _():
        hf = _ln(h, lnfg_ref[...], lnfb_ref[...])
        # tied LM head: contract wte's embedding axis directly (no wte.T copy, no zero bias)
        logits = jax.lax.dot_general(
            hf.astype(jnp.bfloat16), wte_ref[...].astype(jnp.bfloat16),
            dimension_numbers=(((1,), (1,)), ((), ())),
            preferred_element_type=jnp.float32)           # (BT, VPAD), lane-dense
        logits_ref[...] = logits

        # shifted cross-entropy, fused. Padded vocab columns masked out of the
        # logsumexp; rows with target sentinel -1 (last position per sequence)
        # masked out of the mean.
        tgt = tgt_ref[...]                                # (BT, 1) int32
        vcol = jax.lax.broadcasted_iota(jnp.int32, (BT, VPAD), 1)
        lm = jnp.where(vcol < VOCAB, logits, -1e30)
        mx = jnp.max(lm, axis=-1, keepdims=True)
        lse = jnp.log(jnp.sum(jnp.exp(lm - mx), axis=-1, keepdims=True)) + mx
        tl = jnp.sum(jnp.where(vcol == tgt, lm, 0.0), axis=-1, keepdims=True)
        valid = (tgt >= 0).astype(jnp.float32)
        per = (lse - tl) * valid                          # (BT, 1)
        loss_ref[...] = jnp.sum(per, axis=(0, 1), keepdims=True) * (
            1.0 / (BATCH * (SEQ - 1)))


# ---------------- parameter init (deterministic, GPT-2 style, layer-stacked) ----------------
def init_params(key):
    def normal(k, shape, std=0.02):
        return (std * jax.random.normal(k, shape)).astype(jnp.float32)

    ks = jax.random.split(key, 6)
    return {
        "wte": normal(ks[0], (VOCAB, N_EMBD)),
        "wpe": normal(ks[1], (SEQ, N_EMBD), std=0.01),
        "lnf_g": jnp.ones((1, N_EMBD), jnp.float32),
        "lnf_b": jnp.zeros((1, N_EMBD), jnp.float32),
        "ln1_g": jnp.ones((N_LAYER, 1, N_EMBD), jnp.float32),
        "ln1_b": jnp.zeros((N_LAYER, 1, N_EMBD), jnp.float32),
        "c_attn_w": normal(ks[2], (N_LAYER, N_EMBD, 3 * N_EMBD)),
        "c_attn_b": jnp.zeros((N_LAYER, 1, 3 * N_EMBD), jnp.float32),
        "c_proj_w": normal(ks[3], (N_LAYER, N_EMBD, N_EMBD)),
        "c_proj_b": jnp.zeros((N_LAYER, 1, N_EMBD), jnp.float32),
        "ln2_g": jnp.ones((N_LAYER, 1, N_EMBD), jnp.float32),
        "ln2_b": jnp.zeros((N_LAYER, 1, N_EMBD), jnp.float32),
        "c_fc_w": normal(ks[4], (N_LAYER, N_EMBD, 4 * N_EMBD)),
        "c_fc_b": jnp.zeros((N_LAYER, 1, 4 * N_EMBD), jnp.float32),
        "mlp_proj_w": normal(ks[5], (N_LAYER, 4 * N_EMBD, N_EMBD)),
        "mlp_proj_b": jnp.zeros((N_LAYER, 1, N_EMBD), jnp.float32),
    }


# ---------------- forward pass: embedding glue + one fused pallas_call ----------------
def tgpt2_forward(params, input_ids, labels):
    B, T = input_ids.shape
    E = N_EMBD

    # token + position embedding (data-dependent gather stays as JAX glue)
    h0 = (params["wte"][input_ids] + params["wpe"][None, :, :]).astype(jnp.float32)
    h0 = h0.reshape(B * T, E)

    # zero-pad vocab rows to a lane-dense 128-wide LM head / logits slab
    wte_pad = jnp.pad(params["wte"], ((0, VPAD - VOCAB), (0, 0)))

    # additive causal mask (0 keep / -1e9 drop), shared across layers and heads
    row = jnp.arange(T, dtype=jnp.int32)[:, None]
    col = jnp.arange(T, dtype=jnp.int32)[None, :]
    causal_mask = jnp.where(col <= row, 0.0, NEG_INF).astype(jnp.float32)[None]  # (1,T,T)

    # shifted targets with -1 sentinel at the last position of each sequence
    tgt = jnp.concatenate(
        [labels[:, 1:], jnp.full((B, 1), -1, dtype=labels.dtype)], axis=1
    ).reshape(B * T, 1).astype(jnp.int32)

    def per_layer(d0, d1):
        return pl.BlockSpec((1, d0, d1), lambda l: (l, 0, 0))

    def shared(d0, d1):
        return pl.BlockSpec((d0, d1), lambda l: (0, 0))

    logits_pad, loss = pl.pallas_call(
        _tgpt2_kernel,
        out_shape=(
            jax.ShapeDtypeStruct((B * T, VPAD), jnp.float32),
            jax.ShapeDtypeStruct((1, 1), jnp.float32),
        ),
        grid=(N_LAYER,),
        in_specs=[
            shared(B * T, E),                      # h0
            per_layer(1, E),                       # ln1_g
            per_layer(1, E),                       # ln1_b
            per_layer(E, 3 * E),                   # c_attn_w
            per_layer(1, 3 * E),                   # c_attn_b
            per_layer(E, E),                       # c_proj_w
            per_layer(1, E),                       # c_proj_b
            per_layer(1, E),                       # ln2_g
            per_layer(1, E),                       # ln2_b
            per_layer(E, 4 * E),                   # c_fc_w
            per_layer(1, 4 * E),                   # c_fc_b
            per_layer(4 * E, E),                   # mlp_proj_w
            per_layer(1, E),                       # mlp_proj_b
            shared(1, E),                          # lnf_g
            shared(1, E),                          # lnf_b
            shared(VPAD, E),                       # wte (padded)
            pl.BlockSpec((1, T, T), lambda l: (0, 0, 0)),   # causal mask
            shared(B * T, 1),                      # targets
        ],
        out_specs=(
            shared(B * T, VPAD),                   # logits (lane-dense 128)
            shared(1, 1),                          # loss
        ),
        scratch_shapes=[pltpu.VMEM((B * T, E), jnp.float32)],   # residual stream
        compiler_params=pltpu.CompilerParams(
            dimension_semantics=("arbitrary",)),   # layer axis is a sequential carry
    )(
        h0,
        params["ln1_g"], params["ln1_b"],
        params["c_attn_w"], params["c_attn_b"],
        params["c_proj_w"], params["c_proj_b"],
        params["ln2_g"], params["ln2_b"],
        params["c_fc_w"], params["c_fc_b"],
        params["mlp_proj_w"], params["mlp_proj_b"],
        params["lnf_g"], params["lnf_b"],
        wte_pad, causal_mask, tgt,
    )

    logits = logits_pad[:, :VOCAB].reshape(B, T, VOCAB)
    return logits, loss[0, 0]


if __name__ == "__main__":
    key = jax.random.PRNGKey(0)
    pkey, dkey = jax.random.split(key)
    params = init_params(pkey)

    input_ids = jax.random.randint(dkey, (BATCH, SEQ), 0, VOCAB, dtype=jnp.int32)
    labels = input_ids  # standard LM objective: labels == input_ids (HF shifts internally)

    logits, loss = jax.jit(tgpt2_forward)(params, input_ids, labels)
    jax.block_until_ready((logits, loss))

    assert logits.shape == (BATCH, SEQ, VOCAB)
    assert bool(jnp.isfinite(loss))
    print("KERNEL_OK")
</pallas_src>

<mosaic_0001>
module attributes {stable_mosaic.version = 11 : i64} {
  func.func @_tgpt2_kernel(%arg0: i32, %arg1: memref<16x32xf32, #tpu.memory_space<vmem>>, %arg2: memref<1x1x32xf32, #tpu.memory_space<vmem>>, %arg3: memref<1x1x32xf32, #tpu.memory_space<vmem>>, %arg4: memref<1x32x96xf32, #tpu.memory_space<vmem>>, %arg5: memref<1x1x96xf32, #tpu.memory_space<vmem>>, %arg6: memref<1x32x32xf32, #tpu.memory_space<vmem>>, %arg7: memref<1x1x32xf32, #tpu.memory_space<vmem>>, %arg8: memref<1x1x32xf32, #tpu.memory_space<vmem>>, %arg9: memref<1x1x32xf32, #tpu.memory_space<vmem>>, %arg10: memref<1x32x128xf32, #tpu.memory_space<vmem>>, %arg11: memref<1x1x128xf32, #tpu.memory_space<vmem>>, %arg12: memref<1x128x32xf32, #tpu.memory_space<vmem>>, %arg13: memref<1x1x32xf32, #tpu.memory_space<vmem>>, %arg14: memref<1x32xf32, #tpu.memory_space<vmem>>, %arg15: memref<1x32xf32, #tpu.memory_space<vmem>>, %arg16: memref<128x32xf32, #tpu.memory_space<vmem>>, %arg17: memref<1x8x8xf32, #tpu.memory_space<vmem>>, %arg18: memref<16x1xi32, #tpu.memory_space<vmem>>, %arg19: memref<16x128xf32, #tpu.memory_space<vmem>>, %arg20: memref<1x1xf32, #tpu.memory_space<vmem>>, %arg21: memref<16x32xf32, #tpu.memory_space<vmem>>) attributes {dimension_semantics = [#tpu.dimension_semantics<arbitrary>], iteration_bounds = array<i64: 2>, scalar_prefetch = 0 : i64, scratch_operands = 1 : i64, tpu.core_type = #tpu.core_type<tc>, window_params = [{pipeline_mode = #tpu.pipeline_mode<synchronous>, transform_indices = @transform_0, window_bounds = array<i64: 16, 32>}, {transform_indices = @transform_1, window_bounds = array<i64: 1, 1, 32>}, {transform_indices = @transform_2, window_bounds = array<i64: 1, 1, 32>}, {transform_indices = @transform_3, window_bounds = array<i64: 1, 32, 96>}, {transform_indices = @transform_4, window_bounds = array<i64: 1, 1, 96>}, {transform_indices = @transform_5, window_bounds = array<i64: 1, 32, 32>}, {transform_indices = @transform_6, window_bounds = array<i64: 1, 1, 32>}, {transform_indices = @transform_7, window_bounds = array<i64: 1, 1, 32>}, {transform_indices = @transform_8, window_bounds = array<i64: 1, 1, 32>}, {transform_indices = @transform_9, window_bounds = array<i64: 1, 32, 128>}, {transform_indices = @transform_10, window_bounds = array<i64: 1, 1, 128>}, {transform_indices = @transform_11, window_bounds = array<i64: 1, 128, 32>}, {transform_indices = @transform_12, window_bounds = array<i64: 1, 1, 32>}, {pipeline_mode = #tpu.pipeline_mode<synchronous>, transform_indices = @transform_13, window_bounds = array<i64: 1, 32>}, {pipeline_mode = #tpu.pipeline_mode<synchronous>, transform_indices = @transform_14, window_bounds = array<i64: 1, 32>}, {pipeline_mode = #tpu.pipeline_mode<synchronous>, transform_indices = @transform_15, window_bounds = array<i64: 128, 32>}, {pipeline_mode = #tpu.pipeline_mode<synchronous>, transform_indices = @transform_16, window_bounds = array<i64: 1, 8, 8>}, {pipeline_mode = #tpu.pipeline_mode<synchronous>, transform_indices = @transform_17, window_bounds = array<i64: 16, 1>}, {pipeline_mode = #tpu.pipeline_mode<synchronous>, transform_indices = @transform_18, window_bounds = array<i64: 16, 128>}, {pipeline_mode = #tpu.pipeline_mode<synchronous>, transform_indices = @transform_19, window_bounds = array<i64: 1, 1>}]} {
    %c0_i32 = arith.constant 0 : i32
    %0 = arith.cmpi eq, %arg0, %c0_i32 : i32
    %1 = arith.extui %0 : i1 to i32
    %c0_i32_0 = arith.constant 0 : i32
    %2 = arith.cmpi ne, %1, %c0_i32_0 : i32
    scf.if %2 {
      %c0_81 = arith.constant 0 : index
      %c0_82 = arith.constant 0 : index
      %210 = vector.load %arg1[%c0_81, %c0_82] : memref<16x32xf32, #tpu.memory_space<vmem>>, vector<16x32xf32>
      %c0_83 = arith.constant 0 : index
      %c0_84 = arith.constant 0 : index
      %211 = vector.load %arg21[%c0_83, %c0_84] : memref<16x32xf32, #tpu.memory_space<vmem>>, vector<16x32xf32>
      tpu.vector_store %arg21[%c0_83, %c0_84], %210 {strides = array<i32>} : memref<16x32xf32, #tpu.memory_space<vmem>>, vector<16x32xf32>,
    } else {
    }
    %c0 = arith.constant 0 : index
    %c0_1 = arith.constant 0 : index
    %3 = vector.load %arg21[%c0, %c0_1] : memref<16x32xf32, #tpu.memory_space<vmem>>, vector<16x32xf32>
    %c0_2 = arith.constant 0 : index
    %c0_3 = arith.constant 0 : index
    %c0_4 = arith.constant 0 : index
    %4 = vector.load %arg2[%c0_2, %c0_3, %c0_4] : memref<1x1x32xf32, #tpu.memory_space<vmem>>, vector<1x1x32xf32>
    %5 = vector.shape_cast %4 : vector<1x1x32xf32> to vector<1x32xf32>
    %c0_5 = arith.constant 0 : index
    %c0_6 = arith.constant 0 : index
    %c0_7 = arith.constant 0 : index
    %6 = vector.load %arg3[%c0_5, %c0_6, %c0_7] : memref<1x1x32xf32, #tpu.memory_space<vmem>>, vector<1x1x32xf32>
    %7 = vector.shape_cast %6 : vector<1x1x32xf32> to vector<1x32xf32>
    %cst = arith.constant dense<0.000000e+00> : vector<16xf32>
    %8 = vector.multi_reduction <add>, %3, %cst [1] : vector<16x32xf32> to vector<16xf32>
    %9 = vector.shape_cast %8 : vector<16xf32> to vector<16x1xf32>
    %cst_8 = arith.constant 3.200000e+01 : f32
    %10 = vector.broadcast %cst_8 : f32 to vector<16x1xf32>
    %11 = arith.divf %9, %10 : vector<16x1xf32>
    %12 = vector.broadcast %11 : vector<16x1xf32> to vector<16x32xf32>
    %13 = arith.subf %3, %12 : vector<16x32xf32>
    %14 = arith.mulf %13, %13 : vector<16x32xf32>
    %cst_9 = arith.constant dense<0.000000e+00> : vector<16xf32>
    %15 = vector.multi_reduction <add>, %14, %cst_9 [1] : vector<16x32xf32> to vector<16xf32>
    %16 = vector.shape_cast %15 : vector<16xf32> to vector<16x1xf32>
    %cst_10 = arith.constant 3.200000e+01 : f32
    %17 = vector.broadcast %cst_10 : f32 to vector<16x1xf32>
    %18 = arith.divf %16, %17 : vector<16x1xf32>
    %19 = vector.broadcast %11 : vector<16x1xf32> to vector<16x32xf32>
    %20 = arith.subf %3, %19 : vector<16x32xf32>
    %cst_11 = arith.constant 9.99999974E-6 : f32
    %21 = vector.broadcast %cst_11 : f32 to vector<16x1xf32>
    %22 = arith.addf %18, %21 : vector<16x1xf32>
    %23 = math.rsqrt %22 : vector<16x1xf32>
    %24 = vector.broadcast %23 : vector<16x1xf32> to vector<16x32xf32>
    %25 = arith.mulf %20, %24 : vector<16x32xf32>
    %26 = vector.broadcast %5 : vector<1x32xf32> to vector<16x32xf32>
    %27 = arith.mulf %25, %26 : vector<16x32xf32>
    %28 = vector.broadcast %7 : vector<1x32xf32> to vector<16x32xf32>
    %29 = arith.addf %27, %28 : vector<16x32xf32>
    %c0_12 = arith.constant 0 : index
    %c0_13 = arith.constant 0 : index
    %c0_14 = arith.constant 0 : index
    %30 = vector.load %arg4[%c0_12, %c0_13, %c0_14] : memref<1x32x96xf32, #tpu.memory_space<vmem>>, vector<1x32x96xf32>
    %31 = vector.shape_cast %30 : vector<1x32x96xf32> to vector<32x96xf32>
    %c0_15 = arith.constant 0 : index
    %c0_16 = arith.constant 0 : index
    %c0_17 = arith.constant 0 : index
    %32 = vector.load %arg5[%c0_15, %c0_16, %c0_17] : memref<1x1x96xf32, #tpu.memory_space<vmem>>, vector<1x1x96xf32>
    %33 = vector.shape_cast %32 : vector<1x1x96xf32> to vector<1x96xf32>
    %34 = arith.truncf %29 : vector<16x32xf32> to vector<16x32xbf16>
    %35 = arith.truncf %31 : vector<32x96xf32> to vector<32x96xbf16>
    %cst_18 = arith.constant dense<0.000000e+00> : vector<16x96xf32>
    %36 = tpu.matmul %34, %35, %cst_18 {dimension_numbers = #tpu.dot_dimension_numbers<[1], [0], [0], [1], [0, 0, 1, 1], [], []>} : vector<16x32xbf16>, vector<32x96xbf16>, vector<16x96xf32> -> vector<16x96xf32>
    %37 = vector.broadcast %33 : vector<1x96xf32> to vector<16x96xf32>
    %38 = arith.addf %36, %37 : vector<16x96xf32>
    %39 = arith.truncf %38 : vector<16x96xf32> to vector<16x96xbf16>
    %c0_19 = arith.constant 0 : index
    %c0_20 = arith.constant 0 : index
    %c0_21 = arith.constant 0 : index
    %40 = vector.load %arg17[%c0_19, %c0_20, %c0_21] : memref<1x8x8xf32, #tpu.memory_space<vmem>>, vector<1x8x8xf32>
    %41 = vector.extract_strided_slice %39 {offsets = [0, 0], sizes = [16, 8], strides = [1, 1]} : vector<16x96xbf16> to vector<16x8xbf16>
    %42 = vector.shape_cast %41 : vector<16x8xbf16> to vector<2x8x8xbf16>
    %43 = vector.extract_strided_slice %39 {offsets = [0, 32], sizes = [16, 8], strides = [1, 1]} : vector<16x96xbf16> to vector<16x8xbf16>
    %44 = vector.shape_cast %43 : vector<16x8xbf16> to vector<2x8x8xbf16>
    %45 = vector.extract_strided_slice %39 {offsets = [0, 64], sizes = [16, 8], strides = [1, 1]} : vector<16x96xbf16> to vector<16x8xbf16>
    %46 = vector.shape_cast %45 : vector<16x8xbf16> to vector<2x8x8xbf16>
    "tpu.trace_start"() <{level = 10 : i32, message = "bqd,bkd->bqk"}> : () -> ()
    %cst_22 = arith.constant dense<0.000000e+00> : vector<2x8x8xf32>
    %47 = tpu.matmul %42, %44, %cst_22 {dimension_numbers = #tpu.dot_dimension_numbers<[2], [2], [1], [1], [0, 0, 0, 1, 1, 1], [0], [0]>} : vector<2x8x8xbf16>, vector<2x8x8xbf16>, vector<2x8x8xf32> -> vector<2x8x8xf32>
    "tpu.trace_stop"() : () -> ()
    %cst_23 = arith.constant 0.353553385 : f32
    %48 = vector.broadcast %cst_23 : f32 to vector<2x8x8xf32>
    %49 = arith.mulf %47, %48 : vector<2x8x8xf32>
    %50 = vector.broadcast %40 : vector<1x8x8xf32> to vector<2x8x8xf32>
    %51 = arith.addf %49, %50 : vector<2x8x8xf32>
    %cst_24 = arith.constant dense<0xFF800000> : vector<2x8xf32>
    %52 = vector.multi_reduction <maximumf>, %51, %cst_24 [2] : vector<2x8x8xf32> to vector<2x8xf32>
    %53 = vector.shape_cast %52 : vector<2x8xf32> to vector<2x8x1xf32>
    %54 = vector.broadcast %53 : vector<2x8x1xf32> to vector<2x8x8xf32>
    %55 = arith.subf %51, %54 : vector<2x8x8xf32>
    %56 = math.exp %55 : vector<2x8x8xf32>
    %cst_25 = arith.constant dense<0.000000e+00> : vector<2x8xf32>
    %57 = vector.multi_reduction <add>, %56, %cst_25 [2] : vector<2x8x8xf32> to vector<2x8xf32>
    %58 = vector.shape_cast %57 : vector<2x8xf32> to vector<2x8x1xf32>
    %59 = tpu.reciprocal %58 {approx = true} : vector<2x8x1xf32> -> vector<2x8x1xf32>
    %60 = vector.broadcast %59 : vector<2x8x1xf32> to vector<2x8x8xf32>
    %61 = arith.mulf %56, %60 : vector<2x8x8xf32>
    %62 = arith.truncf %61 : vector<2x8x8xf32> to vector<2x8x8xbf16>
    "tpu.trace_start"() <{level = 10 : i32, message = "bqk,bkd->bqd"}> : () -> ()
    %cst_26 = arith.constant dense<0.000000e+00> : vector<2x8x8xf32>
    %63 = tpu.matmul %62, %46, %cst_26 {dimension_numbers = #tpu.dot_dimension_numbers<[2], [1], [1], [2], [0, 0, 0, 1, 1, 2], [0], [0]>} : vector<2x8x8xbf16>, vector<2x8x8xbf16>, vector<2x8x8xf32> -> vector<2x8x8xf32>
    "tpu.trace_stop"() : () -> ()
    %64 = vector.shape_cast %63 : vector<2x8x8xf32> to vector<16x8xf32>
    %65 = vector.extract_strided_slice %39 {offsets = [0, 8], sizes = [16, 8], strides = [1, 1]} : vector<16x96xbf16> to vector<16x8xbf16>
    %66 = vector.shape_cast %65 : vector<16x8xbf16> to vector<2x8x8xbf16>
    %67 = vector.extract_strided_slice %39 {offsets = [0, 40], sizes = [16, 8], strides = [1, 1]} : vector<16x96xbf16> to vector<16x8xbf16>
    %68 = vector.shape_cast %67 : vector<16x8xbf16> to vector<2x8x8xbf16>
    %69 = vector.extract_strided_slice %39 {offsets = [0, 72], sizes = [16, 8], strides = [1, 1]} : vector<16x96xbf16> to vector<16x8xbf16>
    %70 = vector.shape_cast %69 : vector<16x8xbf16> to vector<2x8x8xbf16>
    "tpu.trace_start"() <{level = 10 : i32, message = "bqd,bkd->bqk"}> : () -> ()
    %cst_27 = arith.constant dense<0.000000e+00> : vector<2x8x8xf32>
    %71 = tpu.matmul %66, %68, %cst_27 {dimension_numbers = #tpu.dot_dimension_numbers<[2], [2], [1], [1], [0, 0, 0, 1, 1, 1], [0], [0]>} : vector<2x8x8xbf16>, vector<2x8x8xbf16>, vector<2x8x8xf32> -> vector<2x8x8xf32>
    "tpu.trace_stop"() : () -> ()
    %cst_28 = arith.constant 0.353553385 : f32
    %72 = vector.broadcast %cst_28 : f32 to vector<2x8x8xf32>
    %73 = arith.mulf %71, %72 : vector<2x8x8xf32>
    %74 = vector.broadcast %40 : vector<1x8x8xf32> to vector<2x8x8xf32>
    %75 = arith.addf %73, %74 : vector<2x8x8xf32>
    %cst_29 = arith.constant dense<0xFF800000> : vector<2x8xf32>
    %76 = vector.multi_reduction <maximumf>, %75, %cst_29 [2] : vector<2x8x8xf32> to vector<2x8xf32>
    %77 = vector.shape_cast %76 : vector<2x8xf32> to vector<2x8x1xf32>
    %78 = vector.broadcast %77 : vector<2x8x1xf32> to vector<2x8x8xf32>
    %79 = arith.subf %75, %78 : vector<2x8x8xf32>
    %80 = math.exp %79 : vector<2x8x8xf32>
    %cst_30 = arith.constant dense<0.000000e+00> : vector<2x8xf32>
    %81 = vector.multi_reduction <add>, %80, %cst_30 [2] : vector<2x8x8xf32> to vector<2x8xf32>
    %82 = vector.shape_cast %81 : vector<2x8xf32> to vector<2x8x1xf32>
    %83 = tpu.reciprocal %82 {approx = true} : vector<2x8x1xf32> -> vector<2x8x1xf32>
    %84 = vector.broadcast %83 : vector<2x8x1xf32> to vector<2x8x8xf32>
    %85 = arith.mulf %80, %84 : vector<2x8x8xf32>
    %86 = arith.truncf %85 : vector<2x8x8xf32> to vector<2x8x8xbf16>
    "tpu.trace_start"() <{level = 10 : i32, message = "bqk,bkd->bqd"}> : () -> ()
    %cst_31 = arith.constant dense<0.000000e+00> : vector<2x8x8xf32>
    %87 = tpu.matmul %86, %70, %cst_31 {dimension_numbers = #tpu.dot_dimension_numbers<[2], [1], [1], [2], [0, 0, 0, 1, 1, 2], [0], [0]>} : vector<2x8x8xbf16>, vector<2x8x8xbf16>, vector<2x8x8xf32> -> vector<2x8x8xf32>
    "tpu.trace_stop"() : () -> ()
    %88 = vector.shape_cast %87 : vector<2x8x8xf32> to vector<16x8xf32>
    %89 = vector.extract_strided_slice %39 {offsets = [0, 16], sizes = [16, 8], strides = [1, 1]} : vector<16x96xbf16> to vector<16x8xbf16>
    %90 = vector.shape_cast %89 : vector<16x8xbf16> to vector<2x8x8xbf16>
    %91 = vector.extract_strided_slice %39 {offsets = [0, 48], sizes = [16, 8], strides = [1, 1]} : vector<16x96xbf16> to vector<16x8xbf16>
    %92 = vector.shape_cast %91 : vector<16x8xbf16> to vector<2x8x8xbf16>
    %93 = vector.extract_strided_slice %39 {offsets = [0, 80], sizes = [16, 8], strides = [1, 1]} : vector<16x96xbf16> to vector<16x8xbf16>
    %94 = vector.shape_cast %93 : vector<16x8xbf16> to vector<2x8x8xbf16>
    "tpu.trace_start"() <{level = 10 : i32, message = "bqd,bkd->bqk"}> : () -> ()
    %cst_32 = arith.constant dense<0.000000e+00> : vector<2x8x8xf32>
    %95 = tpu.matmul %90, %92, %cst_32 {dimension_numbers = #tpu.dot_dimension_numbers<[2], [2], [1], [1], [0, 0, 0, 1, 1, 1], [0], [0]>} : vector<2x8x8xbf16>, vector<2x8x8xbf16>, vector<2x8x8xf32> -> vector<2x8x8xf32>
    "tpu.trace_stop"() : () -> ()
    %cst_33 = arith.constant 0.353553385 : f32
    %96 = vector.broadcast %cst_33 : f32 to vector<2x8x8xf32>
    %97 = arith.mulf %95, %96 : vector<2x8x8xf32>
    %98 = vector.broadcast %40 : vector<1x8x8xf32> to vector<2x8x8xf32>
    %99 = arith.addf %97, %98 : vector<2x8x8xf32>
    %cst_34 = arith.constant dense<0xFF800000> : vector<2x8xf32>
    %100 = vector.multi_reduction <maximumf>, %99, %cst_34 [2] : vector<2x8x8xf32> to vector<2x8xf32>
    %101 = vector.shape_cast %100 : vector<2x8xf32> to vector<2x8x1xf32>
    %102 = vector.broadcast %101 : vector<2x8x1xf32> to vector<2x8x8xf32>
    %103 = arith.subf %99, %102 : vector<2x8x8xf32>
    %104 = math.exp %103 : vector<2x8x8xf32>
    %cst_35 = arith.constant dense<0.000000e+00> : vector<2x8xf32>
    %105 = vector.multi_reduction <add>, %104, %cst_35 [2] : vector<2x8x8xf32> to vector<2x8xf32>
    %106 = vector.shape_cast %105 : vector<2x8xf32> to vector<2x8x1xf32>
    %107 = tpu.reciprocal %106 {approx = true} : vector<2x8x1xf32> -> vector<2x8x1xf32>
    %108 = vector.broadcast %107 : vector<2x8x1xf32> to vector<2x8x8xf32>
    %109 = arith.mulf %104, %108 : vector<2x8x8xf32>
    %110 = arith.truncf %109 : vector<2x8x8xf32> to vector<2x8x8xbf16>
    "tpu.trace_start"() <{level = 10 : i32, message = "bqk,bkd->bqd"}> : () -> ()
    %cst_36 = arith.constant dense<0.000000e+00> : vector<2x8x8xf32>
    %111 = tpu.matmul %110, %94, %cst_36 {dimension_numbers = #tpu.dot_dimension_numbers<[2], [1], [1], [2], [0, 0, 0, 1, 1, 2], [0], [0]>} : vector<2x8x8xbf16>, vector<2x8x8xbf16>, vector<2x8x8xf32> -> vector<2x8x8xf32>
    "tpu.trace_stop"() : () -> ()
    %112 = vector.shape_cast %111 : vector<2x8x8xf32> to vector<16x8xf32>
    %113 = vector.extract_strided_slice %39 {offsets = [0, 24], sizes = [16, 8], strides = [1, 1]} : vector<16x96xbf16> to vector<16x8xbf16>
    %114 = vector.shape_cast %113 : vector<16x8xbf16> to vector<2x8x8xbf16>
    %115 = vector.extract_strided_slice %39 {offsets = [0, 56], sizes = [16, 8], strides = [1, 1]} : vector<16x96xbf16> to vector<16x8xbf16>
    %116 = vector.shape_cast %115 : vector<16x8xbf16> to vector<2x8x8xbf16>
    %117 = vector.extract_strided_slice %39 {offsets = [0, 88], sizes = [16, 8], strides = [1, 1]} : vector<16x96xbf16> to vector<16x8xbf16>
    %118 = vector.shape_cast %117 : vector<16x8xbf16> to vector<2x8x8xbf16>
    "tpu.trace_start"() <{level = 10 : i32, message = "bqd,bkd->bqk"}> : () -> ()
    %cst_37 = arith.constant dense<0.000000e+00> : vector<2x8x8xf32>
    %119 = tpu.matmul %114, %116, %cst_37 {dimension_numbers = #tpu.dot_dimension_numbers<[2], [2], [1], [1], [0, 0, 0, 1, 1, 1], [0], [0]>} : vector<2x8x8xbf16>, vector<2x8x8xbf16>, vector<2x8x8xf32> -> vector<2x8x8xf32>
    "tpu.trace_stop"() : () -> ()
    %cst_38 = arith.constant 0.353553385 : f32
    %120 = vector.broadcast %cst_38 : f32 to vector<2x8x8xf32>
    %121 = arith.mulf %119, %120 : vector<2x8x8xf32>
    %122 = vector.broadcast %40 : vector<1x8x8xf32> to vector<2x8x8xf32>
    %123 = arith.addf %121, %122 : vector<2x8x8xf32>
    %cst_39 = arith.constant dense<0xFF800000> : vector<2x8xf32>
    %124 = vector.multi_reduction <maximumf>, %123, %cst_39 [2] : vector<2x8x8xf32> to vector<2x8xf32>
    %125 = vector.shape_cast %124 : vector<2x8xf32> to vector<2x8x1xf32>
    %126 = vector.broadcast %125 : vector<2x8x1xf32> to vector<2x8x8xf32>
    %127 = arith.subf %123, %126 : vector<2x8x8xf32>
    %128 = math.exp %127 : vector<2x8x8xf32>
    %cst_40 = arith.constant dense<0.000000e+00> : vector<2x8xf32>
    %129 = vector.multi_reduction <add>, %128, %cst_40 [2] : vector<2x8x8xf32> to vector<2x8xf32>
    %130 = vector.shape_cast %129 : vector<2x8xf32> to vector<2x8x1xf32>
    %131 = tpu.reciprocal %130 {approx = true} : vector<2x8x1xf32> -> vector<2x8x1xf32>
    %132 = vector.broadcast %131 : vector<2x8x1xf32> to vector<2x8x8xf32>
    %133 = arith.mulf %128, %132 : vector<2x8x8xf32>
    %134 = arith.truncf %133 : vector<2x8x8xf32> to vector<2x8x8xbf16>
    "tpu.trace_start"() <{level = 10 : i32, message = "bqk,bkd->bqd"}> : () -> ()
    %cst_41 = arith.constant dense<0.000000e+00> : vector<2x8x8xf32>
    %135 = tpu.matmul %134, %118, %cst_41 {dimension_numbers = #tpu.dot_dimension_numbers<[2], [1], [1], [2], [0, 0, 0, 1, 1, 2], [0], [0]>} : vector<2x8x8xbf16>, vector<2x8x8xbf16>, vector<2x8x8xf32> -> vector<2x8x8xf32>
    "tpu.trace_stop"() : () -> ()
    %136 = vector.shape_cast %135 : vector<2x8x8xf32> to vector<16x8xf32>
    %137 = tpu.concatenate %64, %88, %112, %136 in 1 : vector<16x8xf32>, vector<16x8xf32>, vector<16x8xf32>, vector<16x8xf32> -> vector<16x32xf32>
    %c0_42 = arith.constant 0 : index
    %c0_43 = arith.constant 0 : index
    %c0_44 = arith.constant 0 : index
    %138 = vector.load %arg6[%c0_42, %c0_43, %c0_44] : memref<1x32x32xf32, #tpu.memory_space<vmem>>, vector<1x32x32xf32>
    %139 = vector.shape_cast %138 : vector<1x32x32xf32> to vector<32x32xf32>
    %c0_45 = arith.constant 0 : index
    %c0_46 = arith.constant 0 : index
    %c0_47 = arith.constant 0 : index
    %140 = vector.load %arg7[%c0_45, %c0_46, %c0_47] : memref<1x1x32xf32, #tpu.memory_space<vmem>>, vector<1x1x32xf32>
    %141 = vector.shape_cast %140 : vector<1x1x32xf32> to vector<1x32xf32>
    %142 = arith.truncf %137 : vector<16x32xf32> to vector<16x32xbf16>
    %143 = arith.truncf %139 : vector<32x32xf32> to vector<32x32xbf16>
    %cst_48 = arith.constant dense<0.000000e+00> : vector<16x32xf32>
    %144 = tpu.matmul %142, %143, %cst_48 {dimension_numbers = #tpu.dot_dimension_numbers<[1], [0], [0], [1], [0, 0, 1, 1], [], []>} : vector<16x32xbf16>, vector<32x32xbf16>, vector<16x32xf32> -> vector<16x32xf32>
    %145 = vector.broadcast %141 : vector<1x32xf32> to vector<16x32xf32>
    %146 = arith.addf %144, %145 : vector<16x32xf32>
    %147 = arith.addf %3, %146 : vector<16x32xf32>
    %c0_49 = arith.constant 0 : index
    %c0_50 = arith.constant 0 : index
    %c0_51 = arith.constant 0 : index
    %148 = vector.load %arg8[%c0_49, %c0_50, %c0_51] : memref<1x1x32xf32, #tpu.memory_space<vmem>>, vector<1x1x32xf32>
    %149 = vector.shape_cast %148 : vector<1x1x32xf32> to vector<1x32xf32>
    %c0_52 = arith.constant 0 : index
    %c0_53 = arith.constant 0 : index
    %c0_54 = arith.constant 0 : index
    %150 = vector.load %arg9[%c0_52, %c0_53, %c0_54] : memref<1x1x32xf32, #tpu.memory_space<vmem>>, vector<1x1x32xf32>
    %151 = vector.shape_cast %150 : vector<1x1x32xf32> to vector<1x32xf32>
    %cst_55 = arith.constant dense<0.000000e+00> : vector<16xf32>
    %152 = vector.multi_reduction <add>, %147, %cst_55 [1] : vector<16x32xf32> to vector<16xf32>
    %153 = vector.shape_cast %152 : vector<16xf32> to vector<16x1xf32>
    %cst_56 = arith.constant 3.200000e+01 : f32
    %154 = vector.broadcast %cst_56 : f32 to vector<16x1xf32>
    %155 = arith.divf %153, %154 : vector<16x1xf32>
    %156 = vector.broadcast %155 : vector<16x1xf32> to vector<16x32xf32>
    %157 = arith.subf %147, %156 : vector<16x32xf32>
    %158 = arith.mulf %157, %157 : vector<16x32xf32>
    %cst_57 = arith.constant dense<0.000000e+00> : vector<16xf32>
    %159 = vector.multi_reduction <add>, %158, %cst_57 [1] : vector<16x32xf32> to vector<16xf32>
    %160 = vector.shape_cast %159 : vector<16xf32> to vector<16x1xf32>
    %cst_58 = arith.constant 3.200000e+01 : f32
    %161 = vector.broadcast %cst_58 : f32 to vector<16x1xf32>
    %162 = arith.divf %160, %161 : vector<16x1xf32>
    %163 = vector.broadcast %155 : vector<16x1xf32> to vector<16x32xf32>
    %164 = arith.subf %147, %163 : vector<16x32xf32>
    %cst_59 = arith.constant 9.99999974E-6 : f32
    %165 = vector.broadcast %cst_59 : f32 to vector<16x1xf32>
    %166 = arith.addf %162, %165 : vector<16x1xf32>
    %167 = math.rsqrt %166 : vector<16x1xf32>
    %168 = vector.broadcast %167 : vector<16x1xf32> to vector<16x32xf32>
    %169 = arith.mulf %164, %168 : vector<16x32xf32>
    %170 = vector.broadcast %149 : vector<1x32xf32> to vector<16x32xf32>
    %171 = arith.mulf %169, %170 : vector<16x32xf32>
    %172 = vector.broadcast %151 : vector<1x32xf32> to vector<16x32xf32>
    %173 = arith.addf %171, %172 : vector<16x32xf32>
    %c0_60 = arith.constant 0 : index
    %c0_61 = arith.constant 0 : index
    %c0_62 = arith.constant 0 : index
    %174 = vector.load %arg10[%c0_60, %c0_61, %c0_62] : memref<1x32x128xf32, #tpu.memory_space<vmem>>, vector<1x32x128xf32>
    %175 = vector.shape_cast %174 : vector<1x32x128xf32> to vector<32x128xf32>
    %c0_63 = arith.constant 0 : index
    %c0_64 = arith.constant 0 : index
    %c0_65 = arith.constant 0 : index
    %176 = vector.load %arg11[%c0_63, %c0_64, %c0_65] : memref<1x1x128xf32, #tpu.memory_space<vmem>>, vector<1x1x128xf32>
    %177 = vector.shape_cast %176 : vector<1x1x128xf32> to vector<1x128xf32>
    %178 = arith.truncf %173 : vector<16x32xf32> to vector<16x32xbf16>
    %179 = arith.truncf %175 : vector<32x128xf32> to vector<32x128xbf16>
    %cst_66 = arith.constant dense<0.000000e+00> : vector<16x128xf32>
    %180 = tpu.matmul %178, %179, %cst_66 {dimension_numbers = #tpu.dot_dimension_numbers<[1], [0], [0], [1], [0, 0, 1, 1], [], []>} : vector<16x32xbf16>, vector<32x128xbf16>, vector<16x128xf32> -> vector<16x128xf32>
    %181 = vector.broadcast %177 : vector<1x128xf32> to vector<16x128xf32>
    %182 = arith.addf %180, %181 : vector<16x128xf32>
    %cst_67 = arith.constant 5.000000e-01 : f32
    %183 = vector.broadcast %cst_67 : f32 to vector<16x128xf32>
    %184 = arith.mulf %183, %182 : vector<16x128xf32>
    %cst_68 = arith.constant 4.471500e-02 : f32
    %185 = vector.broadcast %cst_68 : f32 to vector<16x128xf32>
    %186 = arith.mulf %185, %182 : vector<16x128xf32>
    %187 = arith.mulf %186, %182 : vector<16x128xf32>
    %188 = arith.mulf %187, %182 : vector<16x128xf32>
    %189 = arith.addf %182, %188 : vector<16x128xf32>
    %cst_69 = arith.constant 0.797884583 : f32
    %190 = vector.broadcast %cst_69 : f32 to vector<16x128xf32>
    %191 = arith.mulf %190, %189 : vector<16x128xf32>
    %192 = math.tanh %191 : vector<16x128xf32>
    %cst_70 = arith.constant 1.000000e+00 : f32
    %193 = vector.broadcast %cst_70 : f32 to vector<16x128xf32>
    %194 = arith.addf %193, %192 : vector<16x128xf32>
    %195 = arith.mulf %184, %194 : vector<16x128xf32>
    %c0_71 = arith.constant 0 : index
    %c0_72 = arith.constant 0 : index
    %c0_73 = arith.constant 0 : index
    %196 = vector.load %arg12[%c0_71, %c0_72, %c0_73] : memref<1x128x32xf32, #tpu.memory_space<vmem>>, vector<1x128x32xf32>
    %197 = vector.shape_cast %196 : vector<1x128x32xf32> to vector<128x32xf32>
    %c0_74 = arith.constant 0 : index
    %c0_75 = arith.constant 0 : index
    %c0_76 = arith.constant 0 : index
    %198 = vector.load %arg13[%c0_74, %c0_75, %c0_76] : memref<1x1x32xf32, #tpu.memory_space<vmem>>, vector<1x1x32xf32>
    %199 = vector.shape_cast %198 : vector<1x1x32xf32> to vector<1x32xf32>
    %200 = arith.truncf %195 : vector<16x128xf32> to vector<16x128xbf16>
    %201 = arith.truncf %197 : vector<128x32xf32> to vector<128x32xbf16>
    %cst_77 = arith.constant dense<0.000000e+00> : vector<16x32xf32>
    %202 = tpu.matmul %200, %201, %cst_77 {dimension_numbers = #tpu.dot_dimension_numbers<[1], [0], [0], [1], [0, 0, 1, 1], [], []>} : vector<16x128xbf16>, vector<128x32xbf16>, vector<16x32xf32> -> vector<16x32xf32>
    %203 = vector.broadcast %199 : vector<1x32xf32> to vector<16x32xf32>
    %204 = arith.addf %202, %203 : vector<16x32xf32>
    %205 = arith.addf %147, %204 : vector<16x32xf32>
    %c0_78 = arith.constant 0 : index
    %c0_79 = arith.constant 0 : index
    %206 = vector.load %arg21[%c0_78, %c0_79] : memref<16x32xf32, #tpu.memory_space<vmem>>, vector<16x32xf32>
    tpu.vector_store %arg21[%c0_78, %c0_79], %205 {strides = array<i32>} : memref<16x32xf32, #tpu.memory_space<vmem>>, vector<16x32xf32>,
    %c1_i32 = arith.constant 1 : i32
    %207 = arith.cmpi eq, %arg0, %c1_i32 : i32
    %208 = arith.extui %207 : i1 to i32
    %c0_i32_80 = arith.constant 0 : i32
    %209 = arith.cmpi ne, %208, %c0_i32_80 : i32
    scf.if %209 {
      %c0_81 = arith.constant 0 : index
      %c0_82 = arith.constant 0 : index
      %210 = vector.load %arg14[%c0_81, %c0_82] : memref<1x32xf32, #tpu.memory_space<vmem>>, vector<1x32xf32>
      %c0_83 = arith.constant 0 : index
      %c0_84 = arith.constant 0 : index
      %211 = vector.load %arg15[%c0_83, %c0_84] : memref<1x32xf32, #tpu.memory_space<vmem>>, vector<1x32xf32>
      %cst_85 = arith.constant dense<0.000000e+00> : vector<16xf32>
      %212 = vector.multi_reduction <add>, %205, %cst_85 [1] : vector<16x32xf32> to vector<16xf32>
      %213 = vector.shape_cast %212 : vector<16xf32> to vector<16x1xf32>
      %cst_86 = arith.constant 3.200000e+01 : f32
      %214 = vector.broadcast %cst_86 : f32 to vector<16x1xf32>
      %215 = arith.divf %213, %214 : vector<16x1xf32>
      %216 = vector.broadcast %215 : vector<16x1xf32> to vector<16x32xf32>
      %217 = arith.subf %205, %216 : vector<16x32xf32>
      %218 = arith.mulf %217, %217 : vector<16x32xf32>
      %cst_87 = arith.constant dense<0.000000e+00> : vector<16xf32>
      %219 = vector.multi_reduction <add>, %218, %cst_87 [1] : vector<16x32xf32> to vector<16xf32>
      %220 = vector.shape_cast %219 : vector<16xf32> to vector<16x1xf32>
      %cst_88 = arith.constant 3.200000e+01 : f32
      %221 = vector.broadcast %cst_88 : f32 to vector<16x1xf32>
      %222 = arith.divf %220, %221 : vector<16x1xf32>
      %223 = vector.broadcast %215 : vector<16x1xf32> to vector<16x32xf32>
      %224 = arith.subf %205, %223 : vector<16x32xf32>
      %cst_89 = arith.constant 9.99999974E-6 : f32
      %225 = vector.broadcast %cst_89 : f32 to vector<16x1xf32>
      %226 = arith.addf %222, %225 : vector<16x1xf32>
      %227 = math.rsqrt %226 : vector<16x1xf32>
      %228 = vector.broadcast %227 : vector<16x1xf32> to vector<16x32xf32>
      %229 = arith.mulf %224, %228 : vector<16x32xf32>
      %230 = vector.broadcast %210 : vector<1x32xf32> to vector<16x32xf32>
      %231 = arith.mulf %229, %230 : vector<16x32xf32>
      %232 = vector.broadcast %211 : vector<1x32xf32> to vector<16x32xf32>
      %233 = arith.addf %231, %232 : vector<16x32xf32>
      %234 = arith.truncf %233 : vector<16x32xf32> to vector<16x32xbf16>
      %c0_90 = arith.constant 0 : index
      %c0_91 = arith.constant 0 : index
      %235 = vector.load %arg16[%c0_90, %c0_91] : memref<128x32xf32, #tpu.memory_space<vmem>>, vector<128x32xf32>
      %236 = arith.truncf %235 : vector<128x32xf32> to vector<128x32xbf16>
      %cst_92 = arith.constant dense<0.000000e+00> : vector<16x128xf32>
      %237 = tpu.matmul %234, %236, %cst_92 {dimension_numbers = #tpu.dot_dimension_numbers<[1], [1], [0], [0], [0, 0, 1, 0], [], []>} : vector<16x32xbf16>, vector<128x32xbf16>, vector<16x128xf32> -> vector<16x128xf32>
      %c0_93 = arith.constant 0 : index
      %c0_94 = arith.constant 0 : index
      %238 = vector.load %arg19[%c0_93, %c0_94] : memref<16x128xf32, #tpu.memory_space<vmem>>, vector<16x128xf32>
      tpu.vector_store %arg19[%c0_93, %c0_94], %237 {strides = array<i32>} : memref<16x128xf32, #tpu.memory_space<vmem>>, vector<16x128xf32>,
      %c0_95 = arith.constant 0 : index
      %c0_96 = arith.constant 0 : index
      %239 = vector.load %arg18[%c0_95, %c0_96] : memref<16x1xi32, #tpu.memory_space<vmem>>, vector<16x1xi32>
      %240 = tpu.iota {dimensions = array<i32: 1>} : vector<16x128xi32>
      %c64_i32 = arith.constant 64 : i32
      %241 = vector.broadcast %c64_i32 : i32 to vector<16x128xi32>
      %242 = arith.cmpi slt, %240, %241 : vector<16x128xi32>
      %cst_97 = arith.constant -1.000000e+30 : f32
      %243 = vector.broadcast %cst_97 : f32 to vector<16x128xf32>
      %244 = arith.select %242, %237, %243 : vector<16x128xi1>, vector<16x128xf32>
      %cst_98 = arith.constant dense<0xFF800000> : vector<16xf32>
      %245 = vector.multi_reduction <maximumf>, %244, %cst_98 [1] : vector<16x128xf32> to vector<16xf32>
      %246 = vector.shape_cast %245 : vector<16xf32> to vector<16x1xf32>
      %247 = vector.broadcast %246 : vector<16x1xf32> to vector<16x128xf32>
      %248 = arith.subf %244, %247 : vector<16x128xf32>
      %249 = math.exp %248 : vector<16x128xf32>
      %cst_99 = arith.constant dense<0.000000e+00> : vector<16xf32>
      %250 = vector.multi_reduction <add>, %249, %cst_99 [1] : vector<16x128xf32> to vector<16xf32>
      %251 = vector.shape_cast %250 : vector<16xf32> to vector<16x1xf32>
      %252 = math.log %251 : vector<16x1xf32>
      %253 = arith.addf %252, %246 : vector<16x1xf32>
      %254 = vector.broadcast %239 : vector<16x1xi32> to vector<16x128xi32>
      %255 = arith.cmpi eq, %240, %254 : vector<16x128xi32>
      %cst_100 = arith.constant 0.000000e+00 : f32
      %256 = vector.broadcast %cst_100 : f32 to vector<16x128xf32>
      %257 = arith.select %255, %244, %256 : vector<16x128xi1>, vector<16x128xf32>
      %cst_101 = arith.constant dense<0.000000e+00> : vector<16xf32>
      %258 = vector.multi_reduction <add>, %257, %cst_101 [1] : vector<16x128xf32> to vector<16xf32>
      %259 = vector.shape_cast %258 : vector<16xf32> to vector<16x1xf32>
      %c0_i32_102 = arith.constant 0 : i32
      %260 = vector.broadcast %c0_i32_102 : i32 to vector<16x1xi32>
      %261 = arith.cmpi sge, %239, %260 : vector<16x1xi32>
      %262 = arith.extui %261 : vector<16x1xi1> to vector<16x1xi32>
      %263 = arith.sitofp %262 : vector<16x1xi32> to vector<16x1xf32>
      %264 = arith.subf %253, %259 : vector<16x1xf32>
      %265 = arith.mulf %264, %263 : vector<16x1xf32>
      %266 = vector.shape_cast %265 : vector<16x1xf32> to vector<1x16x1xf32>
      %cst_103 = arith.constant dense<0.000000e+00> : vector<1xf32>
      %267 = vector.multi_reduction <add>, %266, %cst_103 [1, 2] : vector<1x16x1xf32> to vector<1xf32>
      %268 = vector.shape_cast %267 : vector<1xf32> to vector<1x1x1xf32>
      %269 = vector.extract %268[0, 0, 0] : f32 from vector<1x1x1xf32>
      %270 = vector.broadcast %269 : f32 to vector<1x1xf32>
      %cst_104 = arith.constant 0.0714285746 : f32
      %271 = vector.broadcast %cst_104 : f32 to vector<1x1xf32>
      %272 = arith.mulf %270, %271 : vector<1x1xf32>
      %c0_105 = arith.constant 0 : index
      %c0_106 = arith.constant 0 : index
      %273 = vector.load %arg20[%c0_105, %c0_106] : memref<1x1xf32, #tpu.memory_space<vmem>>, vector<1x1xf32>
      tpu.vector_store %arg20[%c0_105, %c0_106], %272 {strides = array<i32>} : memref<1x1xf32, #tpu.memory_space<vmem>>, vector<1x1xf32>,
    } else {
    }
    return
  }
  func.func @transform_0(%arg0: i32) -> (i32, i32) {
    %c0_i32 = arith.constant 0 : i32
    %c0_i32_0 = arith.constant 0 : i32
    %c0_i32_1 = arith.constant 0 : i32
    return %c0_i32, %c0_i32_0 : i32, i32
  }
  func.func @transform_1(%arg0: i32) -> (i32, i32, i32) {
    %c0_i32 = arith.constant 0 : i32
    %c0_i32_0 = arith.constant 0 : i32
    %c0_i32_1 = arith.constant 0 : i32
    return %arg0, %c0_i32, %c0_i32_0 : i32, i32, i32
  }
  func.func @transform_2(%arg0: i32) -> (i32, i32, i32) {
    %c0_i32 = arith.constant 0 : i32
    %c0_i32_0 = arith.constant 0 : i32
    %c0_i32_1 = arith.constant 0 : i32
    return %arg0, %c0_i32, %c0_i32_0 : i32, i32, i32
  }
  func.func @transform_3(%arg0: i32) -> (i32, i32, i32) {
    %c0_i32 = arith.constant 0 : i32
    %c0_i32_0 = arith.constant 0 : i32
    %c0_i32_1 = arith.constant 0 : i32
    return %arg0, %c0_i32, %c0_i32_0 : i32, i32, i32
  }
  func.func @transform_4(%arg0: i32) -> (i32, i32, i32) {
    %c0_i32 = arith.constant 0 : i32
    %c0_i32_0 = arith.constant 0 : i32
    %c0_i32_1 = arith.constant 0 : i32
    return %arg0, %c0_i32, %c0_i32_0 : i32, i32, i32
  }
  func.func @transform_5(%arg0: i32) -> (i32, i32, i32) {
    %c0_i32 = arith.constant 0 : i32
    %c0_i32_0 = arith.constant 0 : i32
    %c0_i32_1 = arith.constant 0 : i32
    return %arg0, %c0_i32, %c0_i32_0 : i32, i32, i32
  }
  func.func @transform_6(%arg0: i32) -> (i32, i32, i32) {
    %c0_i32 = arith.constant 0 : i32
    %c0_i32_0 = arith.constant 0 : i32
    %c0_i32_1 = arith.constant 0 : i32
    return %arg0, %c0_i32, %c0_i32_0 : i32, i32, i32
  }
  func.func @transform_7(%arg0: i32) -> (i32, i32, i32) {
    %c0_i32 = arith.constant 0 : i32
    %c0_i32_0 = arith.constant 0 : i32
    %c0_i32_1 = arith.constant 0 : i32
    return %arg0, %c0_i32, %c0_i32_0 : i32, i32, i32
  }
  func.func @transform_8(%arg0: i32) -> (i32, i32, i32) {
    %c0_i32 = arith.constant 0 : i32
    %c0_i32_0 = arith.constant 0 : i32
    %c0_i32_1 = arith.constant 0 : i32
    return %arg0, %c0_i32, %c0_i32_0 : i32, i32, i32
  }
  func.func @transform_9(%arg0: i32) -> (i32, i32, i32) {
    %c0_i32 = arith.constant 0 : i32
    %c0_i32_0 = arith.constant 0 : i32
    %c0_i32_1 = arith.constant 0 : i32
    return %arg0, %c0_i32, %c0_i32_0 : i32, i32, i32
  }
  func.func @transform_10(%arg0: i32) -> (i32, i32, i32) {
    %c0_i32 = arith.constant 0 : i32
    %c0_i32_0 = arith.constant 0 : i32
    %c0_i32_1 = arith.constant 0 : i32
    return %arg0, %c0_i32, %c0_i32_0 : i32, i32, i32
  }
  func.func @transform_11(%arg0: i32) -> (i32, i32, i32) {
    %c0_i32 = arith.constant 0 : i32
    %c0_i32_0 = arith.constant 0 : i32
    %c0_i32_1 = arith.constant 0 : i32
    return %arg0, %c0_i32, %c0_i32_0 : i32, i32, i32
  }
  func.func @transform_12(%arg0: i32) -> (i32, i32, i32) {
    %c0_i32 = arith.constant 0 : i32
    %c0_i32_0 = arith.constant 0 : i32
    %c0_i32_1 = arith.constant 0 : i32
    return %arg0, %c0_i32, %c0_i32_0 : i32, i32, i32
  }
  func.func @transform_13(%arg0: i32) -> (i32, i32) {
    %c0_i32 = arith.constant 0 : i32
    %c0_i32_0 = arith.constant 0 : i32
    %c0_i32_1 = arith.constant 0 : i32
    return %c0_i32, %c0_i32_0 : i32, i32
  }
  func.func @transform_14(%arg0: i32) -> (i32, i32) {
    %c0_i32 = arith.constant 0 : i32
    %c0_i32_0 = arith.constant 0 : i32
    %c0_i32_1 = arith.constant 0 : i32
    return %c0_i32, %c0_i32_0 : i32, i32
  }
  func.func @transform_15(%arg0: i32) -> (i32, i32) {
    %c0_i32 = arith.constant 0 : i32
    %c0_i32_0 = arith.constant 0 : i32
    %c0_i32_1 = arith.constant 0 : i32
    return %c0_i32, %c0_i32_0 : i32, i32
  }
  func.func @transform_16(%arg0: i32) -> (i32, i32, i32) {
    %c0_i32 = arith.constant 0 : i32
    %c0_i32_0 = arith.constant 0 : i32
    %c0_i32_1 = arith.constant 0 : i32
    %c0_i32_2 = arith.constant 0 : i32
    return %c0_i32, %c0_i32_0, %c0_i32_1 : i32, i32, i32
  }
  func.func @transform_17(%arg0: i32) -> (i32, i32) {
    %c0_i32 = arith.constant 0 : i32
    %c0_i32_0 = arith.constant 0 : i32
    %c0_i32_1 = arith.constant 0 : i32
    return %c0_i32, %c0_i32_0 : i32, i32
  }
  func.func @transform_18(%arg0: i32) -> (i32, i32) {
    %c0_i32 = arith.constant 0 : i32
    %c0_i32_0 = arith.constant 0 : i32
    %c0_i32_1 = arith.constant 0 : i32
    return %c0_i32, %c0_i32_0 : i32, i32
  }
  func.func @transform_19(%arg0: i32) -> (i32, i32) {
    %c0_i32 = arith.constant 0 : i32
    %c0_i32_0 = arith.constant 0 : i32
    %c0_i32_1 = arith.constant 0 : i32
    return %c0_i32, %c0_i32_0 : i32, i32
  }
}

</mosaic_0001>

<llo_original>
// kernel: tgpt2_forward.1
$region0: #{tgpt2_forward.1}
  #allocation0 [shape = 'u32[]', space=smem, size = 0x4, offset = 0x4, fixed_abs, tag = 'smem constant byte address 0x4 - core index']
  #allocation1 [shape = 'u32[72,128]{1,0:T(1,128)}', space=vmem, size = 0x9000, scoped, tag = 'internal scratch']
  #allocation2 [shape = 'f32[16,32]{1,0:T(8,128)}', space=vmem, size = 0x2000, scoped, tag = 'scratch operand']
  %s0 = inlined_call_operand.vmem [shape: f32[16,32], index: 0, kind: input, shape index: {}]
  %s1 = inlined_call_operand.vmem [shape: f32[2,1,32], index: 1, kind: input, shape index: {}]
  %s2 = inlined_call_operand.vmem [shape: f32[2,1,32], index: 2, kind: input, shape index: {}]
  %s3 = inlined_call_operand.vmem [shape: f32[2,32,96], index: 3, kind: input, shape index: {}]
  %s4 = inlined_call_operand.vmem [shape: f32[2,1,96], index: 4, kind: input, shape index: {}]
  %s5 = inlined_call_operand.vmem [shape: f32[2,32,32], index: 5, kind: input, shape index: {}]
  %s6 = inlined_call_operand.vmem [shape: f32[2,1,32], index: 6, kind: input, shape index: {}]
  %s7 = inlined_call_operand.vmem [shape: f32[2,1,32], index: 7, kind: input, shape index: {}]
  %s8 = inlined_call_operand.vmem [shape: f32[2,1,32], index: 8, kind: input, shape index: {}]
  %s9 = inlined_call_operand.vmem [shape: f32[2,32,128], index: 9, kind: input, shape index: {}]
  %s10 = inlined_call_operand.vmem [shape: f32[2,1,128], index: 10, kind: input, shape index: {}]
  %s11 = inlined_call_operand.vmem [shape: f32[2,128,32], index: 11, kind: input, shape index: {}]
  %s12 = inlined_call_operand.vmem [shape: f32[2,1,32], index: 12, kind: input, shape index: {}]
  %s13 = inlined_call_operand.vmem [shape: f32[1,32], index: 13, kind: input, shape index: {}]
  %s14 = inlined_call_operand.vmem [shape: f32[1,32], index: 14, kind: input, shape index: {}]
  %s15 = inlined_call_operand.vmem [shape: f32[128,32], index: 15, kind: input, shape index: {}]
  %s16 = inlined_call_operand.vmem [shape: f32[1,8,8], index: 16, kind: input, shape index: {}]
  %s17 = inlined_call_operand.vmem [shape: s32[16,1], index: 17, kind: input, shape index: {}]
  %s18 = inlined_call_operand.vmem [shape: f32[16,128], index: 18, kind: output, shape index: {0}]
  %s19 = inlined_call_operand.hbm [shape: f32[1,1], index: 19, kind: output, shape index: {1}]
  %20 = xla_tuple %s18, %s19
  %s21 = sld [smem:[#allocation0]]
  $region121: #{tgpt2_forward.1} parent=0
    _
  %s23 = ssub.s32 1, %s21
  %s24 = scalar_select 0, %s23, %s21
  $region1: #{tgpt2_forward.1} parent=0
    #allocation3 [shape = 'u8[512]{0}', space=vmem, size = 0x400, scoped, tag = 'output window, operand 1, single buffered']
    #allocation4 [shape = 's32[2]{0}', space=sflag, size = 0x8, scoped, tag = 'scoped memory for tgpt2_forward.1']
    %25 = vsyncpa [#allocation4], 0
    loop: start=0, step=1, limit=4
    $region2: #{tgpt2_forward.1} parent=1 // loop_pre_header
      _
    $region3: #{tgpt2_forward.1} parent=1 // loop_header
      %s27 = sphi 0, %s31
      %p28 = scmp.ge.s32.totalorder %s27, 4
      %s35 = sphi 0, %s35
      %s37 = sphi 0, %s35
      %s38 = sphi 0, %s37
      %s52 = sphi 0, %s38
      %s58 = sphi 0, %s60
      %s61 = sphi 0, %s58
      %s62 = sphi 0, %s61
      %s78 = sphi 0, %s62
      %s84 = sphi 0, %s86
      %s87 = sphi 0, %s84
      %s88 = sphi 0, %s87
      %s104 = sphi 0, %s88
      %s110 = sphi 0, %s112
      %s113 = sphi 0, %s110
      %s114 = sphi 0, %s113
      %s130 = sphi 0, %s114
      %s136 = sphi 0, %s138
      %s139 = sphi 0, %s136
      %s140 = sphi 0, %s139
      %s156 = sphi 0, %s140
      %s162 = sphi 0, %s164
      %s165 = sphi 0, %s162
      %s166 = sphi 0, %s165
      %s182 = sphi 0, %s166
      %s188 = sphi 0, %s190
      %s191 = sphi 0, %s188
      %s192 = sphi 0, %s191
      %s208 = sphi 0, %s192
      %s214 = sphi 0, %s216
      %s217 = sphi 0, %s214
      %s218 = sphi 0, %s217
      %s234 = sphi 0, %s218
      %s240 = sphi 0, %s242
      %s243 = sphi 0, %s240
      %s244 = sphi 0, %s243
      %s260 = sphi 0, %s244
      %s266 = sphi 0, %s268
      %s269 = sphi 0, %s266
      %s270 = sphi 0, %s269
      %s286 = sphi 0, %s270
      %s292 = sphi 0, %s294
      %s295 = sphi 0, %s292
      %s296 = sphi 0, %s295
      %s312 = sphi 0, %s296
      %s318 = sphi 0, %s320
      %s321 = sphi 0, %s318
      %s322 = sphi 0, %s321
      %s338 = sphi 0, %s322
      %s344 = sphi 0, %s346
      %s347 = sphi 0, %s344
      %s348 = sphi 0, %s347
      %s364 = sphi 0, %s348
      %s368 = sphi 0, %s368
      %s370 = sphi 0, %s368
      %s371 = sphi 0, %s370
      %s385 = sphi 0, %s371
      %s389 = sphi 0, %s389
      %s391 = sphi 0, %s389
      %s392 = sphi 0, %s391
      %s406 = sphi 0, %s392
      %s410 = sphi 0, %s410
      %s412 = sphi 0, %s410
      %s413 = sphi 0, %s412
      %s427 = sphi 0, %s413
      %s431 = sphi 0, %s431
      %s433 = sphi 0, %s431
      %s434 = sphi 0, %s433
      %s448 = sphi 0, %s434
      %s452 = sphi 0, %s452
      %s454 = sphi 0, %s452
      %s455 = sphi 0, %s454
      %s469 = sphi 0, %s455
      %s473 = sphi 0, %s473
      %s475 = sphi 0, %s473
      %s476 = sphi 0, %s475
      %s490 = sphi 0, %s476
      %s494 = sphi 0, %s494
      %s496 = sphi 0, %s494
      %s497 = sphi 0, %s496
      %s511 = sphi 0, %s497
    $region4: #{tgpt2_forward.1} parent=1 // loop_header_branch
      %30 = sbr.rel (%p28) target = $region8
    $region5: #{tgpt2_forward.1} parent=1 // loop_body
      %s32 = ssub.s32 %s27, 1
      %s33 = ssub.s32 %s27, 2
      %s34 = sadd.s32 %s27, 1
      %s36 = sadd.s32 %s35, 1
      %p39 = scmp.eq.s32.totalorder %s27, 1
      %p40 = scmp.ne.s32.totalorder %s35, %s37
      %p41 = scmp.eq.s32.totalorder %s27, 0
      %p42 = por %p40, %p41
      %p43 = scmp.ne.s32.totalorder %s35, %s37
      %p44 = scmp.eq.s32.totalorder %s32, 1
      %p45 = por %p43, %p44
      %p46 = scmp.ne.s32.totalorder %s37, %s38
      %p47 = scmp.eq.s32.totalorder %s32, 0
      %p48 = por %p46, %p47
      %p49 = scmp.ne.s32.totalorder %s37, %s38
      %p50 = scmp.eq.s32.totalorder %s33, 1
      %p51 = por %p49, %p50
      %p53 = scmp.ne.s32.totalorder %s38, %s52
      %p54 = scmp.eq.s32.totalorder %s33, 0
      %p55 = por %p53, %p54
      %s56 = ssub.s32 %s27, %s34
      %p57 = scmp.eq.s32.totalorder %s56, 0
      %s59 = sadd.s32 %s58, 1
      %s60 = scalar_select %p57, %s58, %s59
      %p63 = pneg %p57
      %p64 = scmp.eq.s32.totalorder %s27, 1
      %p65 = por %p63, %p64
      %p66 = scmp.ne.s32.totalorder %s58, %s61
      %p67 = scmp.eq.s32.totalorder %s27, 0
      %p68 = por %p66, %p67
      %p69 = scmp.ne.s32.totalorder %s58, %s61
      %p70 = scmp.eq.s32.totalorder %s32, 1
      %p71 = por %p69, %p70
      %p72 = scmp.ne.s32.totalorder %s61, %s62
      %p73 = scmp.eq.s32.totalorder %s32, 0
      %p74 = por %p72, %p73
      %p75 = scmp.ne.s32.totalorder %s61, %s62
      %p76 = scmp.eq.s32.totalorder %s33, 1
      %p77 = por %p75, %p76
      %p79 = scmp.ne.s32.totalorder %s62, %s78
      %p80 = scmp.eq.s32.totalorder %s33, 0
      %p81 = por %p79, %p80
      %s82 = ssub.s32 %s27, %s34
      %p83 = scmp.eq.s32.totalorder %s82, 0
      %s85 = sadd.s32 %s84, 1
      %s86 = scalar_select %p83, %s84, %s85
      %p89 = pneg %p83
      %p90 = scmp.eq.s32.totalorder %s27, 1
      %p91 = por %p89, %p90
      %p92 = scmp.ne.s32.totalorder %s84, %s87
      %p93 = scmp.eq.s32.totalorder %s27, 0
      %p94 = por %p92, %p93
      %p95 = scmp.ne.s32.totalorder %s84, %s87
      %p96 = scmp.eq.s32.totalorder %s32, 1
      %p97 = por %p95, %p96
      %p98 = scmp.ne.s32.totalorder %s87, %s88
      %p99 = scmp.eq.s32.totalorder %s32, 0
      %p100 = por %p98, %p99
      %p101 = scmp.ne.s32.totalorder %s87, %s88
      %p102 = scmp.eq.s32.totalorder %s33, 1
      %p103 = por %p101, %p102
      %p105 = scmp.ne.s32.totalorder %s88, %s104
      %p106 = scmp.eq.s32.totalorder %s33, 0
      %p107 = por %p105, %p106
      %s108 = ssub.s32 %s27, %s34
      %p109 = scmp.eq.s32.totalorder %s108, 0
      %s111 = sadd.s32 %s110, 1
      %s112 = scalar_select %p109, %s110, %s111
      %p115 = pneg %p109
      %p116 = scmp.eq.s32.totalorder %s27, 1
      %p117 = por %p115, %p116
      %p118 = scmp.ne.s32.totalorder %s110, %s113
      %p119 = scmp.eq.s32.totalorder %s27, 0
      %p120 = por %p118, %p119
      %p121 = scmp.ne.s32.totalorder %s110, %s113
      %p122 = scmp.eq.s32.totalorder %s32, 1
      %p123 = por %p121, %p122
      %p124 = scmp.ne.s32.totalorder %s113, %s114
      %p125 = scmp.eq.s32.totalorder %s32, 0
      %p126 = por %p124, %p125
      %p127 = scmp.ne.s32.totalorder %s113, %s114
      %p128 = scmp.eq.s32.totalorder %s33, 1
      %p129 = por %p127, %p128
      %p131 = scmp.ne.s32.totalorder %s114, %s130
      %p132 = scmp.eq.s32.totalorder %s33, 0
      %p133 = por %p131, %p132
      %s134 = ssub.s32 %s27, %s34
      %p135 = scmp.eq.s32.totalorder %s134, 0
      %s137 = sadd.s32 %s136, 1
      %s138 = scalar_select %p135, %s136, %s137
      %p141 = pneg %p135
      %p142 = scmp.eq.s32.totalorder %s27, 1
      %p143 = por %p141, %p142
      %p144 = scmp.ne.s32.totalorder %s136, %s139
      %p145 = scmp.eq.s32.totalorder %s27, 0
      %p146 = por %p144, %p145
      %p147 = scmp.ne.s32.totalorder %s136, %s139
      %p148 = scmp.eq.s32.totalorder %s32, 1
      %p149 = por %p147, %p148
      %p150 = scmp.ne.s32.totalorder %s139, %s140
      %p151 = scmp.eq.s32.totalorder %s32, 0
      %p152 = por %p150, %p151
      %p153 = scmp.ne.s32.totalorder %s139, %s140
      %p154 = scmp.eq.s32.totalorder %s33, 1
      %p155 = por %p153, %p154
      %p157 = scmp.ne.s32.totalorder %s140, %s156
      %p158 = scmp.eq.s32.totalorder %s33, 0
      %p159 = por %p157, %p158
      %s160 = ssub.s32 %s27, %s34
      %p161 = scmp.eq.s32.totalorder %s160, 0
      %s163 = sadd.s32 %s162, 1
      %s164 = scalar_select %p161, %s162, %s163
      %p167 = pneg %p161
      %p168 = scmp.eq.s32.totalorder %s27, 1
      %p169 = por %p167, %p168
      %p170 = scmp.ne.s32.totalorder %s162, %s165
      %p171 = scmp.eq.s32.totalorder %s27, 0
      %p172 = por %p170, %p171
      %p173 = scmp.ne.s32.totalorder %s162, %s165
      %p174 = scmp.eq.s32.totalorder %s32, 1
      %p175 = por %p173, %p174
      %p176 = scmp.ne.s32.totalorder %s165, %s166
      %p177 = scmp.eq.s32.totalorder %s32, 0
      %p178 = por %p176, %p177
      %p179 = scmp.ne.s32.totalorder %s165, %s166
      %p180 = scmp.eq.s32.totalorder %s33, 1
      %p181 = por %p179, %p180
      %p183 = scmp.ne.s32.totalorder %s166, %s182
      %p184 = scmp.eq.s32.totalorder %s33, 0
      %p185 = por %p183, %p184
      %s186 = ssub.s32 %s27, %s34
      %p187 = scmp.eq.s32.totalorder %s186, 0
      %s189 = sadd.s32 %s188, 1
      %s190 = scalar_select %p187, %s188, %s189
      %p193 = pneg %p187
      %p194 = scmp.eq.s32.totalorder %s27, 1
      %p195 = por %p193, %p194
      %p196 = scmp.ne.s32.totalorder %s188, %s191
      %p197 = scmp.eq.s32.totalorder %s27, 0
      %p198 = por %p196, %p197
      %p199 = scmp.ne.s32.totalorder %s188, %s191
      %p200 = scmp.eq.s32.totalorder %s32, 1
      %p201 = por %p199, %p200
      %p202 = scmp.ne.s32.totalorder %s191, %s192
      %p203 = scmp.eq.s32.totalorder %s32, 0
      %p204 = por %p202, %p203
      %p205 = scmp.ne.s32.totalorder %s191, %s192
      %p206 = scmp.eq.s32.totalorder %s33, 1
      %p207 = por %p205, %p206
      %p209 = scmp.ne.s32.totalorder %s192, %s208
      %p210 = scmp.eq.s32.totalorder %s33, 0
      %p211 = por %p209, %p210
      %s212 = ssub.s32 %s27, %s34
      %p213 = scmp.eq.s32.totalorder %s212, 0
      %s215 = sadd.s32 %s214, 1
      %s216 = scalar_select %p213, %s214, %s215
      %p219 = pneg %p213
      %p220 = scmp.eq.s32.totalorder %s27, 1
      %p221 = por %p219, %p220
      %p222 = scmp.ne.s32.totalorder %s214, %s217
      %p223 = scmp.eq.s32.totalorder %s27, 0
      %p224 = por %p222, %p223
      %p225 = scmp.ne.s32.totalorder %s214, %s217
      %p226 = scmp.eq.s32.totalorder %s32, 1
      %p227 = por %p225, %p226
      %p228 = scmp.ne.s32.totalorder %s217, %s218
      %p229 = scmp.eq.s32.totalorder %s32, 0
      %p230 = por %p228, %p229
      %p231 = scmp.ne.s32.totalorder %s217, %s218
      %p232 = scmp.eq.s32.totalorder %s33, 1
      %p233 = por %p231, %p232
      %p235 = scmp.ne.s32.totalorder %s218, %s234
      %p236 = scmp.eq.s32.totalorder %s33, 0
      %p237 = por %p235, %p236
      %s238 = ssub.s32 %s27, %s34
      %p239 = scmp.eq.s32.totalorder %s238, 0
      %s241 = sadd.s32 %s240, 1
      %s242 = scalar_select %p239, %s240, %s241
      %p245 = pneg %p239
      %p246 = scmp.eq.s32.totalorder %s27, 1
      %p247 = por %p245, %p246
      %p248 = scmp.ne.s32.totalorder %s240, %s243
      %p249 = scmp.eq.s32.totalorder %s27, 0
      %p250 = por %p248, %p249
      %p251 = scmp.ne.s32.totalorder %s240, %s243
      %p252 = scmp.eq.s32.totalorder %s32, 1
      %p253 = por %p251, %p252
      %p254 = scmp.ne.s32.totalorder %s243, %s244
      %p255 = scmp.eq.s32.totalorder %s32, 0
      %p256 = por %p254, %p255
      %p257 = scmp.ne.s32.totalorder %s243, %s244
      %p258 = scmp.eq.s32.totalorder %s33, 1
      %p259 = por %p257, %p258
      %p261 = scmp.ne.s32.totalorder %s244, %s260
      %p262 = scmp.eq.s32.totalorder %s33, 0
      %p263 = por %p261, %p262
      %s264 = ssub.s32 %s27, %s34
      %p265 = scmp.eq.s32.totalorder %s264, 0
      %s267 = sadd.s32 %s266, 1
      %s268 = scalar_select %p265, %s266, %s267
      %p271 = pneg %p265
      %p272 = scmp.eq.s32.totalorder %s27, 1
      %p273 = por %p271, %p272
      %p274 = scmp.ne.s32.totalorder %s266, %s269
      %p275 = scmp.eq.s32.totalorder %s27, 0
      %p276 = por %p274, %p275
      %p277 = scmp.ne.s32.totalorder %s266, %s269
      %p278 = scmp.eq.s32.totalorder %s32, 1
      %p279 = por %p277, %p278
      %p280 = scmp.ne.s32.totalorder %s269, %s270
      %p281 = scmp.eq.s32.totalorder %s32, 0
      %p282 = por %p280, %p281
      %p283 = scmp.ne.s32.totalorder %s269, %s270
      %p284 = scmp.eq.s32.totalorder %s33, 1
      %p285 = por %p283, %p284
      %p287 = scmp.ne.s32.totalorder %s270, %s286
      %p288 = scmp.eq.s32.totalorder %s33, 0
      %p289 = por %p287, %p288
      %s290 = ssub.s32 %s27, %s34
      %p291 = scmp.eq.s32.totalorder %s290, 0
      %s293 = sadd.s32 %s292, 1
      %s294 = scalar_select %p291, %s292, %s293
      %p297 = pneg %p291
      %p298 = scmp.eq.s32.totalorder %s27, 1
      %p299 = por %p297, %p298
      %p300 = scmp.ne.s32.totalorder %s292, %s295
      %p301 = scmp.eq.s32.totalorder %s27, 0
      %p302 = por %p300, %p301
      %p303 = scmp.ne.s32.totalorder %s292, %s295
      %p304 = scmp.eq.s32.totalorder %s32, 1
      %p305 = por %p303, %p304
      %p306 = scmp.ne.s32.totalorder %s295, %s296
      %p307 = scmp.eq.s32.totalorder %s32, 0
      %p308 = por %p306, %p307
      %p309 = scmp.ne.s32.totalorder %s295, %s296
      %p310 = scmp.eq.s32.totalorder %s33, 1
      %p311 = por %p309, %p310
      %p313 = scmp.ne.s32.totalorder %s296, %s312
      %p314 = scmp.eq.s32.totalorder %s33, 0
      %p315 = por %p313, %p314
      %s316 = ssub.s32 %s27, %s34
      %p317 = scmp.eq.s32.totalorder %s316, 0
      %s319 = sadd.s32 %s318, 1
      %s320 = scalar_select %p317, %s318, %s319
      %p323 = pneg %p317
      %p324 = scmp.eq.s32.totalorder %s27, 1
      %p325 = por %p323, %p324
      %p326 = scmp.ne.s32.totalorder %s318, %s321
      %p327 = scmp.eq.s32.totalorder %s27, 0
      %p328 = por %p326, %p327
      %p329 = scmp.ne.s32.totalorder %s318, %s321
      %p330 = scmp.eq.s32.totalorder %s32, 1
      %p331 = por %p329, %p330
      %p332 = scmp.ne.s32.totalorder %s321, %s322
      %p333 = scmp.eq.s32.totalorder %s32, 0
      %p334 = por %p332, %p333
      %p335 = scmp.ne.s32.totalorder %s321, %s322
      %p336 = scmp.eq.s32.totalorder %s33, 1
      %p337 = por %p335, %p336
      %p339 = scmp.ne.s32.totalorder %s322, %s338
      %p340 = scmp.eq.s32.totalorder %s33, 0
      %p341 = por %p339, %p340
      %s342 = ssub.s32 %s27, %s34
      %p343 = scmp.eq.s32.totalorder %s342, 0
      %s345 = sadd.s32 %s344, 1
      %s346 = scalar_select %p343, %s344, %s345
      %p349 = pneg %p343
      %p350 = scmp.eq.s32.totalorder %s27, 1
      %p351 = por %p349, %p350
      %p352 = scmp.ne.s32.totalorder %s344, %s347
      %p353 = scmp.eq.s32.totalorder %s27, 0
      %p354 = por %p352, %p353
      %p355 = scmp.ne.s32.totalorder %s344, %s347
      %p356 = scmp.eq.s32.totalorder %s32, 1
      %p357 = por %p355, %p356
      %p358 = scmp.ne.s32.totalorder %s347, %s348
      %p359 = scmp.eq.s32.totalorder %s32, 0
      %p360 = por %p358, %p359
      %p361 = scmp.ne.s32.totalorder %s347, %s348
      %p362 = scmp.eq.s32.totalorder %s33, 1
      %p363 = por %p361, %p362
      %p365 = scmp.ne.s32.totalorder %s348, %s364
      %p366 = scmp.eq.s32.totalorder %s33, 0
      %p367 = por %p365, %p366
      %s369 = sadd.s32 %s368, 1
      %p372 = scmp.eq.s32.totalorder %s27, 1
      %p373 = scmp.ne.s32.totalorder %s368, %s370
      %p374 = scmp.eq.s32.totalorder %s27, 0
      %p375 = por %p373, %p374
      %p376 = scmp.ne.s32.totalorder %s368, %s370
      %p377 = scmp.eq.s32.totalorder %s32, 1
      %p378 = por %p376, %p377
      %p379 = scmp.ne.s32.totalorder %s370, %s371
      %p380 = scmp.eq.s32.totalorder %s32, 0
      %p381 = por %p379, %p380
      %p382 = scmp.ne.s32.totalorder %s370, %s371
      %p383 = scmp.eq.s32.totalorder %s33, 1
      %p384 = por %p382, %p383
      %p386 = scmp.ne.s32.totalorder %s371, %s385
      %p387 = scmp.eq.s32.totalorder %s33, 0
      %p388 = por %p386, %p387
      %s390 = sadd.s32 %s389, 1
      %p393 = scmp.eq.s32.totalorder %s27, 1
      %p394 = scmp.ne.s32.totalorder %s389, %s391
      %p395 = scmp.eq.s32.totalorder %s27, 0
      %p396 = por %p394, %p395
      %p397 = scmp.ne.s32.totalorder %s389, %s391
      %p398 = scmp.eq.s32.totalorder %s32, 1
      %p399 = por %p397, %p398
      %p400 = scmp.ne.s32.totalorder %s391, %s392
      %p401 = scmp.eq.s32.totalorder %s32, 0
      %p402 = por %p400, %p401
      %p403 = scmp.ne.s32.totalorder %s391, %s392
      %p404 = scmp.eq.s32.totalorder %s33, 1
      %p405 = por %p403, %p404
      %p407 = scmp.ne.s32.totalorder %s392, %s406
      %p408 = scmp.eq.s32.totalorder %s33, 0
      %p409 = por %p407, %p408
      %s411 = sadd.s32 %s410, 1
      %p414 = scmp.eq.s32.totalorder %s27, 1
      %p415 = scmp.ne.s32.totalorder %s410, %s412
      %p416 = scmp.eq.s32.totalorder %s27, 0
      %p417 = por %p415, %p416
      %p418 = scmp.ne.s32.totalorder %s410, %s412
      %p419 = scmp.eq.s32.totalorder %s32, 1
      %p420 = por %p418, %p419
      %p421 = scmp.ne.s32.totalorder %s412, %s413
      %p422 = scmp.eq.s32.totalorder %s32, 0
      %p423 = por %p421, %p422
      %p424 = scmp.ne.s32.totalorder %s412, %s413
      %p425 = scmp.eq.s32.totalorder %s33, 1
      %p426 = por %p424, %p425
      %p428 = scmp.ne.s32.totalorder %s413, %s427
      %p429 = scmp.eq.s32.totalorder %s33, 0
      %p430 = por %p428, %p429
      %s432 = sadd.s32 %s431, 1
      %p435 = scmp.eq.s32.totalorder %s27, 1
      %p436 = scmp.ne.s32.totalorder %s431, %s433
      %p437 = scmp.eq.s32.totalorder %s27, 0
      %p438 = por %p436, %p437
      %p439 = scmp.ne.s32.totalorder %s431, %s433
      %p440 = scmp.eq.s32.totalorder %s32, 1
      %p441 = por %p439, %p440
      %p442 = scmp.ne.s32.totalorder %s433, %s434
      %p443 = scmp.eq.s32.totalorder %s32, 0
      %p444 = por %p442, %p443
      %p445 = scmp.ne.s32.totalorder %s433, %s434
      %p446 = scmp.eq.s32.totalorder %s33, 1
      %p447 = por %p445, %p446
      %p449 = scmp.ne.s32.totalorder %s434, %s448
      %p450 = scmp.eq.s32.totalorder %s33, 0
      %p451 = por %p449, %p450
      %s453 = sadd.s32 %s452, 1
      %p456 = scmp.eq.s32.totalorder %s27, 1
      %p457 = scmp.ne.s32.totalorder %s452, %s454
      %p458 = scmp.eq.s32.totalorder %s27, 0
      %p459 = por %p457, %p458
      %p460 = scmp.ne.s32.totalorder %s452, %s454
      %p461 = scmp.eq.s32.totalorder %s32, 1
      %p462 = por %p460, %p461
      %p463 = scmp.ne.s32.totalorder %s454, %s455
      %p464 = scmp.eq.s32.totalorder %s32, 0
      %p465 = por %p463, %p464
      %p466 = scmp.ne.s32.totalorder %s454, %s455
      %p467 = scmp.eq.s32.totalorder %s33, 1
      %p468 = por %p466, %p467
      %p470 = scmp.ne.s32.totalorder %s455, %s469
      %p471 = scmp.eq.s32.totalorder %s33, 0
      %p472 = por %p470, %p471
      %s474 = sadd.s32 %s473, 1
      %p477 = scmp.eq.s32.totalorder %s27, 1
      %p478 = scmp.ne.s32.totalorder %s473, %s475
      %p479 = scmp.eq.s32.totalorder %s27, 0
      %p480 = por %p478, %p479
      %p481 = scmp.ne.s32.totalorder %s473, %s475
      %p482 = scmp.eq.s32.totalorder %s32, 1
      %p483 = por %p481, %p482
      %p484 = scmp.ne.s32.totalorder %s475, %s476
      %p485 = scmp.eq.s32.totalorder %s32, 0
      %p486 = por %p484, %p485
      %p487 = scmp.ne.s32.totalorder %s475, %s476
      %p488 = scmp.eq.s32.totalorder %s33, 1
      %p489 = por %p487, %p488
      %p491 = scmp.ne.s32.totalorder %s476, %s490
      %p492 = scmp.eq.s32.totalorder %s33, 0
      %p493 = por %p491, %p492
      %s495 = sadd.s32 %s494, 1
      %p498 = scmp.eq.s32.totalorder %s27, 1
      %p499 = scmp.ne.s32.totalorder %s494, %s496
      %p500 = scmp.eq.s32.totalorder %s27, 0
      %p501 = por %p499, %p500
      %p502 = scmp.ne.s32.totalorder %s494, %s496
      %p503 = scmp.eq.s32.totalorder %s32, 1
      %p504 = por %p502, %p503
      %p505 = scmp.ne.s32.totalorder %s496, %s497
      %p506 = scmp.eq.s32.totalorder %s32, 0
      %p507 = por %p505, %p506
      %p508 = scmp.ne.s32.totalorder %s496, %s497
      %p509 = scmp.eq.s32.totalorder %s33, 1
      %p510 = por %p508, %p509
      %p512 = scmp.ne.s32.totalorder %s497, %s511
      %p513 = scmp.eq.s32.totalorder %s33, 0
      %p514 = por %p512, %p513
      %p515 = scmp.le.s32.totalorder 1, %s27
      %p516 = scmp.lt.s32.totalorder %s27, 3
      %p517 = pnand %p515, %p516
      %p518 = pneg %p517
      // Predicated region
      $region9: #{tgpt2_forward.1} parent=5 // pred_check
        _
      $region10: #{tgpt2_forward.1} parent=5 // pred_check_branch
        %520 = sbr.rel (%p517) target = $region12
      $region11: #{tgpt2_forward.1} parent=5 // pred_region
        %s521 = ssub.s32 %s27, 1
        // Predicated region
        $region13: #{tgpt2_forward.1} parent=11 // pred_check
          %p522 = pneg %p48
        $region14: #{tgpt2_forward.1} parent=11 // pred_check_branch
          %524 = sbr.rel (%p522) target = $region16
        $region15: #{tgpt2_forward.1} parent=11 // pred_region
          _
        $region16: #{tgpt2_forward.1} parent=11 // pred_fallthru
          _
        // Predicated region
        $region17: #{tgpt2_forward.1} parent=11 // pred_check
          %p525 = pneg %p381
        $region18: #{tgpt2_forward.1} parent=11 // pred_check_branch
          %527 = sbr.rel (%p525) target = $region20
        $region19: #{tgpt2_forward.1} parent=11 // pred_region
          _
        $region20: #{tgpt2_forward.1} parent=11 // pred_fallthru
          _
        // Predicated region
        $region21: #{tgpt2_forward.1} parent=11 // pred_check
          %p528 = pneg %p402
        $region22: #{tgpt2_forward.1} parent=11 // pred_check_branch
          %530 = sbr.rel (%p528) target = $region24
        $region23: #{tgpt2_forward.1} parent=11 // pred_region
          _
        $region24: #{tgpt2_forward.1} parent=11 // pred_fallthru
          _
        // Predicated region
        $region25: #{tgpt2_forward.1} parent=11 // pred_check
          %p531 = pneg %p423
        $region26: #{tgpt2_forward.1} parent=11 // pred_check_branch
          %533 = sbr.rel (%p531) target = $region28
        $region27: #{tgpt2_forward.1} parent=11 // pred_region
          _
        $region28: #{tgpt2_forward.1} parent=11 // pred_fallthru
          _
        // Predicated region
        $region29: #{tgpt2_forward.1} parent=11 // pred_check
          %p534 = pneg %p444
        $region30: #{tgpt2_forward.1} parent=11 // pred_check_branch
          %536 = sbr.rel (%p534) target = $region32
        $region31: #{tgpt2_forward.1} parent=11 // pred_region
          _
        $region32: #{tgpt2_forward.1} parent=11 // pred_fallthru
          _
        // Predicated region
        $region33: #{tgpt2_forward.1} parent=11 // pred_check
          %p537 = pneg %p465
        $region34: #{tgpt2_forward.1} parent=11 // pred_check_branch
          %539 = sbr.rel (%p537) target = $region36
        $region35: #{tgpt2_forward.1} parent=11 // pred_region
          _
        $region36: #{tgpt2_forward.1} parent=11 // pred_fallthru
          _
      $region12: #{tgpt2_forward.1} parent=5 // pred_fallthru
        _
      %p540 = scmp.lt.s32.totalorder %s27, 2
      // Predicated region
      $region37: #{tgpt2_forward.1} parent=5 // pred_check
        %p541 = pneg %p540
      $region38: #{tgpt2_forward.1} parent=5 // pred_check_branch
        %543 = sbr.rel (%p541) target = $region40
      $region39: #{tgpt2_forward.1} parent=5 // pred_region
        // Predicated region
        $region41: #{tgpt2_forward.1} parent=39 // pred_check
          %p544 = pneg %p68
        $region42: #{tgpt2_forward.1} parent=39 // pred_check_branch
          %546 = sbr.rel (%p544) target = $region44
        $region43: #{tgpt2_forward.1} parent=39 // pred_region
          %p547 = scmp.lt.s32.totalorder %s27, 1
          %s548 = scalar_select %p547, %s27, 1
          %s549 = scalar_lea.vmem %s1, %s548
        $region44: #{tgpt2_forward.1} parent=39 // pred_fallthru
          _
        // Predicated region
        $region45: #{tgpt2_forward.1} parent=39 // pred_check
          %p550 = pneg %p94
        $region46: #{tgpt2_forward.1} parent=39 // pred_check_branch
          %552 = sbr.rel (%p550) target = $region48
        $region47: #{tgpt2_forward.1} parent=39 // pred_region
          %p553 = scmp.lt.s32.totalorder %s27, 1
          %s554 = scalar_select %p553, %s27, 1
          %s555 = scalar_lea.vmem %s2, %s554
        $region48: #{tgpt2_forward.1} parent=39 // pred_fallthru
          _
        // Predicated region
        $region49: #{tgpt2_forward.1} parent=39 // pred_check
          %p556 = pneg %p120
        $region50: #{tgpt2_forward.1} parent=39 // pred_check_branch
          %558 = sbr.rel (%p556) target = $region52
        $region51: #{tgpt2_forward.1} parent=39 // pred_region
          %p559 = scmp.lt.s32.totalorder %s27, 1
          %s560 = scalar_select %p559, %s27, 1
          %s561 = smul.addr %s560, 4
          %s562 = smul.addr %s561, 8
          %s563 = scalar_lea.vmem %s3, %s562
        $region52: #{tgpt2_forward.1} parent=39 // pred_fallthru
          _
        // Predicated region
        $region53: #{tgpt2_forward.1} parent=39 // pred_check
          %p564 = pneg %p146
        $region54: #{tgpt2_forward.1} parent=39 // pred_check_branch
          %566 = sbr.rel (%p564) target = $region56
        $region55: #{tgpt2_forward.1} parent=39 // pred_region
          %p567 = scmp.lt.s32.totalorder %s27, 1
          %s568 = scalar_select %p567, %s27, 1
          %s569 = scalar_lea.vmem %s4, %s568
        $region56: #{tgpt2_forward.1} parent=39 // pred_fallthru
          _
        // Predicated region
        $region57: #{tgpt2_forward.1} parent=39 // pred_check
          %p570 = pneg %p172
        $region58: #{tgpt2_forward.1} parent=39 // pred_check_branch
          %572 = sbr.rel (%p570) target = $region60
        $region59: #{tgpt2_forward.1} parent=39 // pred_region
          %p573 = scmp.lt.s32.totalorder %s27, 1
          %s574 = scalar_select %p573, %s27, 1
          %s575 = smul.addr %s574, 4
          %s576 = smul.addr %s575, 8
          %s577 = scalar_lea.vmem %s5, %s576
        $region60: #{tgpt2_forward.1} parent=39 // pred_fallthru
          _
        // Predicated region
        $region61: #{tgpt2_forward.1} parent=39 // pred_check
          %p578 = pneg %p198
        $region62: #{tgpt2_forward.1} parent=39 // pred_check_branch
          %580 = sbr.rel (%p578) target = $region64
        $region63: #{tgpt2_forward.1} parent=39 // pred_region
          %p581 = scmp.lt.s32.totalorder %s27, 1
          %s582 = scalar_select %p581, %s27, 1
          %s583 = scalar_lea.vmem %s6, %s582
        $region64: #{tgpt2_forward.1} parent=39 // pred_fallthru
          _
        // Predicated region
        $region65: #{tgpt2_forward.1} parent=39 // pred_check
          %p584 = pneg %p224
        $region66: #{tgpt2_forward.1} parent=39 // pred_check_branch
          %586 = sbr.rel (%p584) target = $region68
        $region67: #{tgpt2_forward.1} parent=39 // pred_region
          %p587 = scmp.lt.s32.totalorder %s27, 1
          %s588 = scalar_select %p587, %s27, 1
          %s589 = scalar_lea.vmem %s7, %s588
        $region68: #{tgpt2_forward.1} parent=39 // pred_fallthru
          _
        // Predicated region
        $region69: #{tgpt2_forward.1} parent=39 // pred_check
          %p590 = pneg %p250
        $region70: #{tgpt2_forward.1} parent=39 // pred_check_branch
          %592 = sbr.rel (%p590) target = $region72
        $region71: #{tgpt2_forward.1} parent=39 // pred_region
          %p593 = scmp.lt.s32.totalorder %s27, 1
          %s594 = scalar_select %p593, %s27, 1
          %s595 = scalar_lea.vmem %s8, %s594
        $region72: #{tgpt2_forward.1} parent=39 // pred_fallthru
          _
        // Predicated region
        $region73: #{tgpt2_forward.1} parent=39 // pred_check
          %p596 = pneg %p276
        $region74: #{tgpt2_forward.1} parent=39 // pred_check_branch
          %598 = sbr.rel (%p596) target = $region76
        $region75: #{tgpt2_forward.1} parent=39 // pred_region
          %p599 = scmp.lt.s32.totalorder %s27, 1
          %s600 = scalar_select %p599, %s27, 1
          %s601 = smul.addr %s600, 4
          %s602 = smul.addr %s601, 8
          %s603 = scalar_lea.vmem %s9, %s602
        $region76: #{tgpt2_forward.1} parent=39 // pred_fallthru
          _
        // Predicated region
        $region77: #{tgpt2_forward.1} parent=39 // pred_check
          %p604 = pneg %p302
        $region78: #{tgpt2_forward.1} parent=39 // pred_check_branch
          %606 = sbr.rel (%p604) target = $region80
        $region79: #{tgpt2_forward.1} parent=39 // pred_region
          %p607 = scmp.lt.s32.totalorder %s27, 1
          %s608 = scalar_select %p607, %s27, 1
          %s609 = scalar_lea.vmem %s10, %s608
        $region80: #{tgpt2_forward.1} parent=39 // pred_fallthru
          _
        // Predicated region
        $region81: #{tgpt2_forward.1} parent=39 // pred_check
          %p610 = pneg %p328
        $region82: #{tgpt2_forward.1} parent=39 // pred_check_branch
          %612 = sbr.rel (%p610) target = $region84
        $region83: #{tgpt2_forward.1} parent=39 // pred_region
          %p613 = scmp.lt.s32.totalorder %s27, 1
          %s614 = scalar_select %p613, %s27, 1
          %s615 = smul.addr %s614, 16
          %s616 = smul.addr %s615, 8
          %s617 = scalar_lea.vmem %s11, %s616
        $region84: #{tgpt2_forward.1} parent=39 // pred_fallthru
          _
        // Predicated region
        $region85: #{tgpt2_forward.1} parent=39 // pred_check
          %p618 = pneg %p354
        $region86: #{tgpt2_forward.1} parent=39 // pred_check_branch
          %620 = sbr.rel (%p618) target = $region88
        $region87: #{tgpt2_forward.1} parent=39 // pred_region
          %p621 = scmp.lt.s32.totalorder %s27, 1
          %s622 = scalar_select %p621, %s27, 1
          %s623 = scalar_lea.vmem %s12, %s622
        $region88: #{tgpt2_forward.1} parent=39 // pred_fallthru
          _
      $region40: #{tgpt2_forward.1} parent=5 // pred_fallthru
        _
      %p624 = scmp.le.s32.totalorder 1, %s27
      %p625 = scmp.lt.s32.totalorder %s27, 3
      %p626 = pnand %p624, %p625
      %p627 = pneg %p626
      // Predicated region
      $region89: #{tgpt2_forward.1} parent=5 // pred_check
        _
      $region90: #{tgpt2_forward.1} parent=5 // pred_check_branch
        %629 = sbr.rel (%p626) target = $region92
      $region91: #{tgpt2_forward.1} parent=5 // pred_region
        %s630 = ssub.s32 %s27, 1
        %p631 = pneg %p48
        %p632 = pneg %p45
        %p633 = scmp.lt.s32.totalorder %s32, 1
        %s634 = scalar_select %p633, %s32, 1
        %s635 = scalar_lea.vmem %s1, %s634
        %p636 = pneg %p74
        %p637 = pneg %p71
        %p638 = scmp.lt.s32.totalorder %s32, 1
        %s639 = scalar_select %p638, %s32, 1
        %s640 = scalar_lea.vmem %s2, %s639
        %p641 = pneg %p100
        %p642 = pneg %p97
        %p643 = scmp.lt.s32.totalorder %s32, 1
        %s644 = scalar_select %p643, %s32, 1
        %s645 = smul.addr %s644, 4
        %s646 = smul.addr %s645, 8
        %s647 = scalar_lea.vmem %s3, %s646
        %p648 = pneg %p126
        %p649 = pneg %p123
        %p650 = scmp.lt.s32.totalorder %s32, 1
        %s651 = scalar_select %p650, %s32, 1
        %s652 = scalar_lea.vmem %s4, %s651
        %p653 = pneg %p152
        %p654 = pneg %p149
        %p655 = scmp.lt.s32.totalorder %s32, 1
        %s656 = scalar_select %p655, %s32, 1
        %s657 = smul.addr %s656, 4
        %s658 = smul.addr %s657, 8
        %s659 = scalar_lea.vmem %s5, %s658
        %p660 = pneg %p178
        %p661 = pneg %p175
        %p662 = scmp.lt.s32.totalorder %s32, 1
        %s663 = scalar_select %p662, %s32, 1
        %s664 = scalar_lea.vmem %s6, %s663
        %p665 = pneg %p204
        %p666 = pneg %p201
        %p667 = scmp.lt.s32.totalorder %s32, 1
        %s668 = scalar_select %p667, %s32, 1
        %s669 = scalar_lea.vmem %s7, %s668
        %p670 = pneg %p230
        %p671 = pneg %p227
        %p672 = scmp.lt.s32.totalorder %s32, 1
        %s673 = scalar_select %p672, %s32, 1
        %s674 = scalar_lea.vmem %s8, %s673
        %p675 = pneg %p256
        %p676 = pneg %p253
        %p677 = scmp.lt.s32.totalorder %s32, 1
        %s678 = scalar_select %p677, %s32, 1
        %s679 = smul.addr %s678, 4
        %s680 = smul.addr %s679, 8
        %s681 = scalar_lea.vmem %s9, %s680
        %p682 = pneg %p282
        %p683 = pneg %p279
        %p684 = scmp.lt.s32.totalorder %s32, 1
        %s685 = scalar_select %p684, %s32, 1
        %s686 = scalar_lea.vmem %s10, %s685
        %p687 = pneg %p308
        %p688 = pneg %p305
        %p689 = scmp.lt.s32.totalorder %s32, 1
        %s690 = scalar_select %p689, %s32, 1
        %s691 = smul.addr %s690, 16
        %s692 = smul.addr %s691, 8
        %s693 = scalar_lea.vmem %s11, %s692
        %p694 = pneg %p334
        %p695 = pneg %p331
        %p696 = scmp.lt.s32.totalorder %s32, 1
        %s697 = scalar_select %p696, %s32, 1
        %s698 = scalar_lea.vmem %s12, %s697
        %p699 = pneg %p360
        %p700 = pneg %p357
        %p701 = pneg %p381
        %p702 = pneg %p378
        %p703 = pneg %p402
        %p704 = pneg %p399
        %p705 = pneg %p423
        %p706 = pneg %p420
        %p707 = pneg %p444
        %p708 = pneg %p441
        %p709 = pneg %p465
        %p710 = pneg %p462
        %p711 = pneg %p486
        %p712 = pneg %p483
        %p713 = pneg %p507
        %p714 = pneg %p504
        %p715 = scmp.lt.s32.totalorder %s32, 1
        %s716 = scalar_select %p715, %s32, 1
        %s717 = scalar_lea.vmem %s1, %s716
        %p718 = scmp.lt.s32.totalorder %s32, 1
        %s719 = scalar_select %p718, %s32, 1
        %s720 = scalar_lea.vmem %s2, %s719
        %p721 = scmp.lt.s32.totalorder %s32, 1
        %s722 = scalar_select %p721, %s32, 1
        %s723 = smul.addr %s722, 4
        %s724 = smul.addr %s723, 8
        %s725 = scalar_lea.vmem %s3, %s724
        %p726 = scmp.lt.s32.totalorder %s32, 1
        %s727 = scalar_select %p726, %s32, 1
        %s728 = scalar_lea.vmem %s4, %s727
        %p729 = scmp.lt.s32.totalorder %s32, 1
        %s730 = scalar_select %p729, %s32, 1
        %s731 = smul.addr %s730, 4
        %s732 = smul.addr %s731, 8
        %s733 = scalar_lea.vmem %s5, %s732
        %p734 = scmp.lt.s32.totalorder %s32, 1
        %s735 = scalar_select %p734, %s32, 1
        %s736 = scalar_lea.vmem %s6, %s735
        %p737 = scmp.lt.s32.totalorder %s32, 1
        %s738 = scalar_select %p737, %s32, 1
        %s739 = scalar_lea.vmem %s7, %s738
        %p740 = scmp.lt.s32.totalorder %s32, 1
        %s741 = scalar_select %p740, %s32, 1
        %s742 = scalar_lea.vmem %s8, %s741
        %p743 = scmp.lt.s32.totalorder %s32, 1
        %s744 = scalar_select %p743, %s32, 1
        %s745 = smul.addr %s744, 4
        %s746 = smul.addr %s745, 8
        %s747 = scalar_lea.vmem %s9, %s746
        %p748 = scmp.lt.s32.totalorder %s32, 1
        %s749 = scalar_select %p748, %s32, 1
        %s750 = scalar_lea.vmem %s10, %s749
        %p751 = scmp.lt.s32.totalorder %s32, 1
        %s752 = scalar_select %p751, %s32, 1
        %s753 = smul.addr %s752, 16
        %s754 = smul.addr %s753, 8
        %s755 = scalar_lea.vmem %s11, %s754
        %p756 = scmp.lt.s32.totalorder %s32, 1
        %s757 = scalar_select %p756, %s32, 1
        %s758 = scalar_lea.vmem %s12, %s757
        %p760 = scmp.eq.s32.totalorder %s32, 0
        // Predicated region
        $region93: #{tgpt2_forward.1} parent=91 // pred_check
          %p761 = pneg %p760
        $region94: #{tgpt2_forward.1} parent=91 // pred_check_branch
          %763 = sbr.rel (%p761) target = $region96
        $region95: #{tgpt2_forward.1} parent=91 // pred_region
          %v764 = vld [vmem:[%s0] sm:$0xff]
          %v765 = vld [vmem:[%s0 + $0x8] sm:$0xff]
          %vm766 = vcmask 261120
          %767 = vst.msk [vmem:[#allocation2] sm:$0xff] %vm766, %v764
          %768 = vst.msk [vmem:[#allocation2 + $0x8] sm:$0xff] %vm766, %v765
        $region96: #{tgpt2_forward.1} parent=91 // pred_fallthru
          _
        %v769 = vld [vmem:[#allocation2] sm:$0xff]
        %v770 = vld [vmem:[#allocation2 + $0x8] sm:$0xff]
        %v771 = vld [vmem:[%s717] sm:$0x1]
        %v772 = vld [vmem:[%s720] sm:$0x1]
        %vm773 = vcmask 261120
        %v774 = vsel %vm773, %v769, 0.0
        %775 = vadd.xlane.f32.xlu0 %v774
        %v776 = vpop.xlane.xlu0 %775
        %v777 = vsel %vm773, %v770, 0.0
        %778 = vadd.xlane.f32.xlu0 %v777
        %v779 = vpop.xlane.xlu0 %778
        %v780 = vrcp.pop 32.0
        %v781 = vmul.f32 32.0, %v780
        %v782 = vsub.f32 1.0, %v781
        %v783 = vmul.f32 %v780, %v782
        %v784 = vadd.f32 %v780, %v783
        %vm785 = vweird.f32 %v780
        %v786 = vsel %vm785, %v780, %v784
        %v787 = vmul.f32 %v776, %v786
        %v788 = vmul.f32 %v779, %v786
        %v789 = vsub.f32 %v769, %v787
        %v790 = vsub.f32 %v770, %v788
        %v791 = vmul.f32 %v789, %v789
        %v792 = vmul.f32 %v790, %v790
        %v793 = vsel %vm773, %v791, 0.0
        %794 = vadd.xlane.f32.xlu0 %v793
        %v795 = vpop.xlane.xlu0 %794
        %v796 = vsel %vm773, %v792, 0.0
        %797 = vadd.xlane.f32.xlu0 %v796
        %v798 = vpop.xlane.xlu0 %797
        %v799 = vmul.f32 %v795, %v786
        %v800 = vmul.f32 %v798, %v786
        %v801 = vadd.f32 %v799, 1e-05
        %v802 = vadd.f32 %v800, 1e-05
        %v803 = vrsqrt.pop %v801
        %v804 = vmul.f32 %v803, %v801
        %v805 = vmul.f32 %v804, %v803
        %v806 = vmul.f32 0.5, %v805
        %v807 = vsub.f32 1.5, %v806
        %v808 = vmul.f32 %v803, %v807
        %vm809 = vweird.f32 %v801
        %vm810 = vweird.f32 %v803
        %vm811 = vmor %vm809, %vm810
        %v812 = vsel %vm811, %v803, %v808
        %v813 = vrsqrt.pop %v802
        %v814 = vmul.f32 %v813, %v802
        %v815 = vmul.f32 %v814, %v813
        %v816 = vmul.f32 0.5, %v815
        %v817 = vsub.f32 1.5, %v816
        %v818 = vmul.f32 %v813, %v817
        %vm819 = vweird.f32 %v802
        %vm820 = vweird.f32 %v813
        %vm821 = vmor %vm819, %vm820
        %v822 = vsel %vm821, %v813, %v818
        %v823 = vmul.f32 %v789, %v812
        %v824 = vmul.f32 %v790, %v822
        %v826 = vperm.slane %v771, 0
        %v828 = vmul.f32 %v823, %v826
        %v829 = vmul.f32 %v824, %v826
        %v831 = vperm.slane %v772, 0
        %v833 = vadd.f32 %v828, %v831
        %v834 = vadd.f32 %v829, %v831
        %v835 = vld [vmem:[%s725] sm:$0xff]
        %v836 = vld [vmem:[%s725 + $0x8] sm:$0xff]
        %v837 = vld [vmem:[%s725 + $0x10] sm:$0xff]
        %v838 = vld [vmem:[%s725 + $0x18] sm:$0xff]
        %v839 = vld [vmem:[%s728] sm:$0x1]
        %v840 = vpack.c.bf16 %v834, %v833
        %v841 = vpack.c.bf16 %v836, %v835
        %v842 = vpack.c.bf16 %v838, %v837
        %v844 = vperm.slane %v839, 0
        %v847 = vsel %vm773, %v840, 0
        %849 = vmatpush.bf16.msra.mxu0 0
        %850 = vmatpush.bf16.msra.mxu0 0
        %851 = vmatpush.bf16.msra.mxu0 0
        %852 = vmatpush.bf16.msra.mxu0 0
        %853 = vmatpush.bf16.msra.mxu0 0
        %854 = vmatpush.bf16.msra.mxu0 0
        %855 = vmatpush.bf16.msra.mxu0 %v842
        %856 = vmatpush.bf16.msra.mxu0 %v841
        %857 = vmatmul.bf16.gmra.mxu0 %v847
        %v858 = vpop.f32.mrf.mxu0
        %v859 = vadd.f32 %v844, %v858
        %v860 = vpop.f32.mrf.mxu0
        %v861 = vadd.f32 %v844, %v860
        %862 = vdwg.mxu0
        %v863 = vpack.c.bf16 %v859, %v859
        %v864 = vpack.c.bf16 %v861, %v861
        %v865 = vld [vmem:[%s16] sm:$0xff]
        %v867 = vunpack.c.l.b16 %v863
        %v868 = vpack.c.b16 %v867, %v867
        %869 = vrot.lane.b32.xlu0 %v868, 96
        %v870 = vpop.permute.xlu0 %869
        %vm871 = vcmask 64512
        %v873 = vsel %vm871, %v863, 0
        %v876 = vsel %vm871, %v870, 0
        %878 = vmatpush.bf16.xpose.msra.mxu0 0
        %879 = vmatpush.bf16.xpose.msra.mxu0 0
        %880 = vmatpush.bf16.xpose.msra.mxu0 0
        %881 = vmatpush.bf16.xpose.msra.mxu0 0
        %882 = vmatpush.bf16.xpose.msra.mxu0 0
        %883 = vmatpush.bf16.xpose.msra.mxu0 0
        %884 = vmatpush.bf16.xpose.msra.mxu0 0
        %885 = vmatpush.bf16.xpose.msra.mxu0 %v876
        %886 = vmatmul.bf16.gmra.mxu0 %v873
        %v887 = vpop.f32.mrf.mxu0
        %v888 = vadd.f32 0.0, %v887
        %v889 = vpop.f32.mrf.mxu0
        %890 = vdwg.mxu0
        %v892 = vunpack.c.l.b16 %v864
        %v893 = vpack.c.b16 %v892, %v892
        %894 = vrot.lane.b32.xlu0 %v893, 96
        %v895 = vpop.permute.xlu0 %894
        %v897 = vsel %vm871, %v864, 0
        %v900 = vsel %vm871, %v895, 0
        %902 = vmatpush.bf16.xpose.msra.mxu0 0
        %903 = vmatpush.bf16.xpose.msra.mxu0 0
        %904 = vmatpush.bf16.xpose.msra.mxu0 0
        %905 = vmatpush.bf16.xpose.msra.mxu0 0
        %906 = vmatpush.bf16.xpose.msra.mxu0 0
        %907 = vmatpush.bf16.xpose.msra.mxu0 0
        %908 = vmatpush.bf16.xpose.msra.mxu0 0
        %909 = vmatpush.bf16.xpose.msra.mxu0 %v900
        %910 = vmatmul.bf16.gmra.mxu0 %v897
        %v911 = vpop.f32.mrf.mxu0
        %v912 = vadd.f32 0.0, %v911
        %v913 = vpop.f32.mrf.mxu0
        %914 = vdwg.mxu0
        %v915 = vmul.f32 %v888, 0.35355338
        %v916 = vmul.f32 %v912, 0.35355338
        %v917 = vadd.f32 %v915, %v865
        %v918 = vadd.f32 %v916, %v865
        %v919 = vsel %vm871, %v917, -inf
        %920 = vmax.xlane.f32.xlu0 %v919
        %v921 = vpop.xlane.xlu0 %920
        %v922 = vsel %vm871, %v918, -inf
        %923 = vmax.xlane.f32.xlu0 %v922
        %v924 = vpop.xlane.xlu0 %923
        %v925 = vsub.f32 %v917, %v921
        %v926 = vsub.f32 %v918, %v924
        %v927 = vmul.f32 %v925, 1.442695
        %v928 = vpow.pop %v927
        %v929 = vmul.f32 %v926, 1.442695
        %v930 = vpow.pop %v929
        %v931 = vsel %vm871, %v928, 0.0
        %932 = vadd.xlane.f32.xlu0 %v931
        %v933 = vpop.xlane.xlu0 %932
        %v934 = vsel %vm871, %v930, 0.0
        %935 = vadd.xlane.f32.xlu0 %v934
        %v936 = vpop.xlane.xlu0 %935
        %v937 = vrcp.pop %v933
        %v938 = vrcp.pop %v936
        %v939 = vmul.f32 %v928, %v937
        %v940 = vmul.f32 %v930, %v938
        %v941 = vpack.c.bf16 %v939, %v939
        %v942 = vpack.c.bf16 %v940, %v940
        %943 = vrot.lane.b32.xlu0 %v868, 64
        %v944 = vpop.permute.xlu0 %943
        %v946 = vsel %vm871, %v941, 0
        %vm948 = vcmask 1043456
        %v950 = vsel %vm948, %v944, 0
        %952 = vmatpush.bf16.msra.mxu0 0
        %953 = vmatpush.bf16.msra.mxu0 0
        %954 = vmatpush.bf16.msra.mxu0 0
        %955 = vmatpush.bf16.msra.mxu0 0
        %956 = vmatpush.bf16.msra.mxu0 0
        %957 = vmatpush.bf16.msra.mxu0 0
        %958 = vmatpush.bf16.msra.mxu0 0
        %959 = vmatpush.bf16.msra.mxu0 %v950
        %960 = vmatmul.bf16.gmra.mxu0 %v946
        %v961 = vpop.f32.mrf.mxu0
        %v962 = vadd.f32 0.0, %v961
        %v963 = vpop.f32.mrf.mxu0
        %964 = vdwg.mxu0
        %965 = vrot.lane.b32.xlu0 %v893, 64
        %v966 = vpop.permute.xlu0 %965
        %v968 = vsel %vm871, %v942, 0
        %v971 = vsel %vm948, %v966, 0
        %973 = vmatpush.bf16.msra.mxu0 0
        %974 = vmatpush.bf16.msra.mxu0 0
        %975 = vmatpush.bf16.msra.mxu0 0
        %976 = vmatpush.bf16.msra.mxu0 0
        %977 = vmatpush.bf16.msra.mxu0 0
        %978 = vmatpush.bf16.msra.mxu0 0
        %979 = vmatpush.bf16.msra.mxu0 0
        %980 = vmatpush.bf16.msra.mxu0 %v971
        %981 = vmatmul.bf16.gmra.mxu0 %v968
        %v982 = vpop.f32.mrf.mxu0
        %v983 = vadd.f32 0.0, %v982
        %v984 = vpop.f32.mrf.mxu0
        %985 = vdwg.mxu0
        %986 = vrot.lane.b32.xlu0 %v868, 120
        %v987 = vpop.permute.xlu0 %986
        %988 = vrot.lane.b32.xlu0 %v868, 88
        %v989 = vpop.permute.xlu0 %988
        %v991 = vsel %vm871, %v987, 0
        %v994 = vsel %vm871, %v989, 0
        %996 = vmatpush.bf16.xpose.msra.mxu0 0
        %997 = vmatpush.bf16.xpose.msra.mxu0 0
        %998 = vmatpush.bf16.xpose.msra.mxu0 0
        %999 = vmatpush.bf16.xpose.msra.mxu0 0
        %1000 = vmatpush.bf16.xpose.msra.mxu0 0
        %1001 = vmatpush.bf16.xpose.msra.mxu0 0
        %1002 = vmatpush.bf16.xpose.msra.mxu0 0
        %1003 = vmatpush.bf16.xpose.msra.mxu0 %v994
        %1004 = vmatmul.bf16.gmra.mxu0 %v991
        %v1005 = vpop.f32.mrf.mxu0
        %v1006 = vadd.f32 0.0, %v1005
        %v1007 = vpop.f32.mrf.mxu0
        %1008 = vdwg.mxu0
        %1009 = vrot.lane.b32.xlu0 %v893, 120
        %v1010 = vpop.permute.xlu0 %1009
        %1011 = vrot.lane.b32.xlu0 %v893, 88
        %v1012 = vpop.permute.xlu0 %1011
        %v1014 = vsel %vm871, %v1010, 0
        %v1017 = vsel %vm871, %v1012, 0
        %1019 = vmatpush.bf16.xpose.msra.mxu0 0
        %1020 = vmatpush.bf16.xpose.msra.mxu0 0
        %1021 = vmatpush.bf16.xpose.msra.mxu0 0
        %1022 = vmatpush.bf16.xpose.msra.mxu0 0
        %1023 = vmatpush.bf16.xpose.msra.mxu0 0
        %1024 = vmatpush.bf16.xpose.msra.mxu0 0
        %1025 = vmatpush.bf16.xpose.msra.mxu0 0
        %1026 = vmatpush.bf16.xpose.msra.mxu0 %v1017
        %1027 = vmatmul.bf16.gmra.mxu0 %v1014
        %v1028 = vpop.f32.mrf.mxu0
        %v1029 = vadd.f32 0.0, %v1028
        %v1030 = vpop.f32.mrf.mxu0
        %1031 = vdwg.mxu0
        %v1032 = vmul.f32 %v1006, 0.35355338
        %v1033 = vmul.f32 %v1029, 0.35355338
        %v1034 = vadd.f32 %v1032, %v865
        %v1035 = vadd.f32 %v1033, %v865
        %v1036 = vsel %vm871, %v1034, -inf
        %1037 = vmax.xlane.f32.xlu0 %v1036
        %v1038 = vpop.xlane.xlu0 %1037
        %v1039 = vsel %vm871, %v1035, -inf
        %1040 = vmax.xlane.f32.xlu0 %v1039
        %v1041 = vpop.xlane.xlu0 %1040
        %v1042 = vsub.f32 %v1034, %v1038
        %v1043 = vsub.f32 %v1035, %v1041
        %v1044 = vmul.f32 %v1042, 1.442695
        %v1045 = vpow.pop %v1044
        %v1046 = vmul.f32 %v1043, 1.442695
        %v1047 = vpow.pop %v1046
        %v1048 = vsel %vm871, %v1045, 0.0
        %1049 = vadd.xlane.f32.xlu0 %v1048
        %v1050 = vpop.xlane.xlu0 %1049
        %v1051 = vsel %vm871, %v1047, 0.0
        %1052 = vadd.xlane.f32.xlu0 %v1051
        %v1053 = vpop.xlane.xlu0 %1052
        %v1054 = vrcp.pop %v1050
        %v1055 = vrcp.pop %v1053
        %v1056 = vmul.f32 %v1045, %v1054
        %v1057 = vmul.f32 %v1047, %v1055
        %v1058 = vpack.c.bf16 %v1056, %v1056
        %v1059 = vpack.c.bf16 %v1057, %v1057
        %1060 = vrot.lane.b32.xlu0 %v868, 56
        %v1061 = vpop.permute.xlu0 %1060
        %v1063 = vsel %vm871, %v1058, 0
        %v1066 = vsel %vm948, %v1061, 0
        %1068 = vmatpush.bf16.msra.mxu0 0
        %1069 = vmatpush.bf16.msra.mxu0 0
        %1070 = vmatpush.bf16.msra.mxu0 0
        %1071 = vmatpush.bf16.msra.mxu0 0
        %1072 = vmatpush.bf16.msra.mxu0 0
        %1073 = vmatpush.bf16.msra.mxu0 0
        %1074 = vmatpush.bf16.msra.mxu0 0
        %1075 = vmatpush.bf16.msra.mxu0 %v1066
        %1076 = vmatmul.bf16.gmra.mxu0 %v1063
        %v1077 = vpop.f32.mrf.mxu0
        %v1078 = vadd.f32 0.0, %v1077
        %v1079 = vpop.f32.mrf.mxu0
        %1080 = vdwg.mxu0
        %1081 = vrot.lane.b32.xlu0 %v893, 56
        %v1082 = vpop.permute.xlu0 %1081
        %v1084 = vsel %vm871, %v1059, 0
        %v1087 = vsel %vm948, %v1082, 0
        %1089 = vmatpush.bf16.msra.mxu0 0
        %1090 = vmatpush.bf16.msra.mxu0 0
        %1091 = vmatpush.bf16.msra.mxu0 0
        %1092 = vmatpush.bf16.msra.mxu0 0
        %1093 = vmatpush.bf16.msra.mxu0 0
        %1094 = vmatpush.bf16.msra.mxu0 0
        %1095 = vmatpush.bf16.msra.mxu0 0
        %1096 = vmatpush.bf16.msra.mxu0 %v1087
        %1097 = vmatmul.bf16.gmra.mxu0 %v1084
        %v1098 = vpop.f32.mrf.mxu0
        %v1099 = vadd.f32 0.0, %v1098
        %v1100 = vpop.f32.mrf.mxu0
        %1101 = vdwg.mxu0
        %1102 = vrot.lane.b32.xlu0 %v868, 112
        %v1103 = vpop.permute.xlu0 %1102
        %1104 = vrot.lane.b32.xlu0 %v868, 80
        %v1105 = vpop.permute.xlu0 %1104
        %v1107 = vsel %vm871, %v1103, 0
        %v1110 = vsel %vm871, %v1105, 0
        %1112 = vmatpush.bf16.xpose.msra.mxu0 0
        %1113 = vmatpush.bf16.xpose.msra.mxu0 0
        %1114 = vmatpush.bf16.xpose.msra.mxu0 0
        %1115 = vmatpush.bf16.xpose.msra.mxu0 0
        %1116 = vmatpush.bf16.xpose.msra.mxu0 0
        %1117 = vmatpush.bf16.xpose.msra.mxu0 0
        %1118 = vmatpush.bf16.xpose.msra.mxu0 0
        %1119 = vmatpush.bf16.xpose.msra.mxu0 %v1110
        %1120 = vmatmul.bf16.gmra.mxu0 %v1107
        %v1121 = vpop.f32.mrf.mxu0
        %v1122 = vadd.f32 0.0, %v1121
        %v1123 = vpop.f32.mrf.mxu0
        %1124 = vdwg.mxu0
        %1125 = vrot.lane.b32.xlu0 %v893, 112
        %v1126 = vpop.permute.xlu0 %1125
        %1127 = vrot.lane.b32.xlu0 %v893, 80
        %v1128 = vpop.permute.xlu0 %1127
        %v1130 = vsel %vm871, %v1126, 0
        %v1133 = vsel %vm871, %v1128, 0
        %1135 = vmatpush.bf16.xpose.msra.mxu0 0
        %1136 = vmatpush.bf16.xpose.msra.mxu0 0
        %1137 = vmatpush.bf16.xpose.msra.mxu0 0
        %1138 = vmatpush.bf16.xpose.msra.mxu0 0
        %1139 = vmatpush.bf16.xpose.msra.mxu0 0
        %1140 = vmatpush.bf16.xpose.msra.mxu0 0
        %1141 = vmatpush.bf16.xpose.msra.mxu0 0
        %1142 = vmatpush.bf16.xpose.msra.mxu0 %v1133
        %1143 = vmatmul.bf16.gmra.mxu0 %v1130
        %v1144 = vpop.f32.mrf.mxu0
        %v1145 = vadd.f32 0.0, %v1144
        %v1146 = vpop.f32.mrf.mxu0
        %1147 = vdwg.mxu0
        %v1148 = vmul.f32 %v1122, 0.35355338
        %v1149 = vmul.f32 %v1145, 0.35355338
        %v1150 = vadd.f32 %v1148, %v865
        %v1151 = vadd.f32 %v1149, %v865
        %v1152 = vsel %vm871, %v1150, -inf
        %1153 = vmax.xlane.f32.xlu0 %v1152
        %v1154 = vpop.xlane.xlu0 %1153
        %v1155 = vsel %vm871, %v1151, -inf
        %1156 = vmax.xlane.f32.xlu0 %v1155
        %v1157 = vpop.xlane.xlu0 %1156
        %v1158 = vsub.f32 %v1150, %v1154
        %v1159 = vsub.f32 %v1151, %v1157
        %v1160 = vmul.f32 %v1158, 1.442695
        %v1161 = vpow.pop %v1160
        %v1162 = vmul.f32 %v1159, 1.442695
        %v1163 = vpow.pop %v1162
        %v1164 = vsel %vm871, %v1161, 0.0
        %1165 = vadd.xlane.f32.xlu0 %v1164
        %v1166 = vpop.xlane.xlu0 %1165
        %v1167 = vsel %vm871, %v1163, 0.0
        %1168 = vadd.xlane.f32.xlu0 %v1167
        %v1169 = vpop.xlane.xlu0 %1168
        %v1170 = vrcp.pop %v1166
        %v1171 = vrcp.pop %v1169
        %v1172 = vmul.f32 %v1161, %v1170
        %v1173 = vmul.f32 %v1163, %v1171
        %v1174 = vpack.c.bf16 %v1172, %v1172
        %v1175 = vpack.c.bf16 %v1173, %v1173
        %1176 = vrot.lane.b32.xlu0 %v868, 48
        %v1177 = vpop.permute.xlu0 %1176
        %v1179 = vsel %vm871, %v1174, 0
        %v1182 = vsel %vm948, %v1177, 0
        %1184 = vmatpush.bf16.msra.mxu0 0
        %1185 = vmatpush.bf16.msra.mxu0 0
        %1186 = vmatpush.bf16.msra.mxu0 0
        %1187 = vmatpush.bf16.msra.mxu0 0
        %1188 = vmatpush.bf16.msra.mxu0 0
        %1189 = vmatpush.bf16.msra.mxu0 0
        %1190 = vmatpush.bf16.msra.mxu0 0
        %1191 = vmatpush.bf16.msra.mxu0 %v1182
        %1192 = vmatmul.bf16.gmra.mxu0 %v1179
        %v1193 = vpop.f32.mrf.mxu0
        %v1194 = vadd.f32 0.0, %v1193
        %v1195 = vpop.f32.mrf.mxu0
        %1196 = vdwg.mxu0
        %1197 = vrot.lane.b32.xlu0 %v893, 48
        %v1198 = vpop.permute.xlu0 %1197
        %v1200 = vsel %vm871, %v1175, 0
        %v1203 = vsel %vm948, %v1198, 0
        %1205 = vmatpush.bf16.msra.mxu0 0
        %1206 = vmatpush.bf16.msra.mxu0 0
        %1207 = vmatpush.bf16.msra.mxu0 0
        %1208 = vmatpush.bf16.msra.mxu0 0
        %1209 = vmatpush.bf16.msra.mxu0 0
        %1210 = vmatpush.bf16.msra.mxu0 0
        %1211 = vmatpush.bf16.msra.mxu0 0
        %1212 = vmatpush.bf16.msra.mxu0 %v1203
        %1213 = vmatmul.bf16.gmra.mxu0 %v1200
        %v1214 = vpop.f32.mrf.mxu0
        %v1215 = vadd.f32 0.0, %v1214
        %v1216 = vpop.f32.mrf.mxu0
        %1217 = vdwg.mxu0
        %1218 = vrot.lane.b32.xlu0 %v868, 104
        %v1219 = vpop.permute.xlu0 %1218
        %1220 = vrot.lane.b32.xlu0 %v868, 72
        %v1221 = vpop.permute.xlu0 %1220
        %v1223 = vsel %vm871, %v1219, 0
        %v1226 = vsel %vm871, %v1221, 0
        %1228 = vmatpush.bf16.xpose.msra.mxu0 0
        %1229 = vmatpush.bf16.xpose.msra.mxu0 0
        %1230 = vmatpush.bf16.xpose.msra.mxu0 0
        %1231 = vmatpush.bf16.xpose.msra.mxu0 0
        %1232 = vmatpush.bf16.xpose.msra.mxu0 0
        %1233 = vmatpush.bf16.xpose.msra.mxu0 0
        %1234 = vmatpush.bf16.xpose.msra.mxu0 0
        %1235 = vmatpush.bf16.xpose.msra.mxu0 %v1226
        %1236 = vmatmul.bf16.gmra.mxu0 %v1223
        %v1237 = vpop.f32.mrf.mxu0
        %v1238 = vadd.f32 0.0, %v1237
        %v1239 = vpop.f32.mrf.mxu0
        %1240 = vdwg.mxu0
        %1241 = vrot.lane.b32.xlu0 %v893, 104
        %v1242 = vpop.permute.xlu0 %1241
        %1243 = vrot.lane.b32.xlu0 %v893, 72
        %v1244 = vpop.permute.xlu0 %1243
        %v1246 = vsel %vm871, %v1242, 0
        %v1249 = vsel %vm871, %v1244, 0
        %1251 = vmatpush.bf16.xpose.msra.mxu0 0
        %1252 = vmatpush.bf16.xpose.msra.mxu0 0
        %1253 = vmatpush.bf16.xpose.msra.mxu0 0
        %1254 = vmatpush.bf16.xpose.msra.mxu0 0
        %1255 = vmatpush.bf16.xpose.msra.mxu0 0
        %1256 = vmatpush.bf16.xpose.msra.mxu0 0
        %1257 = vmatpush.bf16.xpose.msra.mxu0 0
        %1258 = vmatpush.bf16.xpose.msra.mxu0 %v1249
        %1259 = vmatmul.bf16.gmra.mxu0 %v1246
        %v1260 = vpop.f32.mrf.mxu0
        %v1261 = vadd.f32 0.0, %v1260
        %v1262 = vpop.f32.mrf.mxu0
        %1263 = vdwg.mxu0
        %v1264 = vmul.f32 %v1238, 0.35355338
        %v1265 = vmul.f32 %v1261, 0.35355338
        %v1266 = vadd.f32 %v1264, %v865
        %v1267 = vadd.f32 %v1265, %v865
        %v1268 = vsel %vm871, %v1266, -inf
        %1269 = vmax.xlane.f32.xlu0 %v1268
        %v1270 = vpop.xlane.xlu0 %1269
        %v1271 = vsel %vm871, %v1267, -inf
        %1272 = vmax.xlane.f32.xlu0 %v1271
        %v1273 = vpop.xlane.xlu0 %1272
        %v1274 = vsub.f32 %v1266, %v1270
        %v1275 = vsub.f32 %v1267, %v1273
        %v1276 = vmul.f32 %v1274, 1.442695
        %v1277 = vpow.pop %v1276
        %v1278 = vmul.f32 %v1275, 1.442695
        %v1279 = vpow.pop %v1278
        %v1280 = vsel %vm871, %v1277, 0.0
        %1281 = vadd.xlane.f32.xlu0 %v1280
        %v1282 = vpop.xlane.xlu0 %1281
        %v1283 = vsel %vm871, %v1279, 0.0
        %1284 = vadd.xlane.f32.xlu0 %v1283
        %v1285 = vpop.xlane.xlu0 %1284
        %v1286 = vrcp.pop %v1282
        %v1287 = vrcp.pop %v1285
        %v1288 = vmul.f32 %v1277, %v1286
        %v1289 = vmul.f32 %v1279, %v1287
        %v1290 = vpack.c.bf16 %v1288, %v1288
        %v1291 = vpack.c.bf16 %v1289, %v1289
        %1292 = vrot.lane.b32.xlu0 %v868, 40
        %v1293 = vpop.permute.xlu0 %1292
        %v1295 = vsel %vm871, %v1290, 0
        %v1298 = vsel %vm948, %v1293, 0
        %1300 = vmatpush.bf16.msra.mxu0 0
        %1301 = vmatpush.bf16.msra.mxu0 0
        %1302 = vmatpush.bf16.msra.mxu0 0
        %1303 = vmatpush.bf16.msra.mxu0 0
        %1304 = vmatpush.bf16.msra.mxu0 0
        %1305 = vmatpush.bf16.msra.mxu0 0
        %1306 = vmatpush.bf16.msra.mxu0 0
        %1307 = vmatpush.bf16.msra.mxu0 %v1298
        %1308 = vmatmul.bf16.gmra.mxu0 %v1295
        %v1309 = vpop.f32.mrf.mxu0
        %v1310 = vadd.f32 0.0, %v1309
        %v1311 = vpop.f32.mrf.mxu0
        %1312 = vdwg.mxu0
        %1313 = vrot.lane.b32.xlu0 %v893, 40
        %v1314 = vpop.permute.xlu0 %1313
        %v1316 = vsel %vm871, %v1291, 0
        %v1319 = vsel %vm948, %v1314, 0
        %1321 = vmatpush.bf16.msra.mxu0 0
        %1322 = vmatpush.bf16.msra.mxu0 0
        %1323 = vmatpush.bf16.msra.mxu0 0
        %1324 = vmatpush.bf16.msra.mxu0 0
        %1325 = vmatpush.bf16.msra.mxu0 0
        %1326 = vmatpush.bf16.msra.mxu0 0
        %1327 = vmatpush.bf16.msra.mxu0 0
        %1328 = vmatpush.bf16.msra.mxu0 %v1319
        %1329 = vmatmul.bf16.gmra.mxu0 %v1316
        %v1330 = vpop.f32.mrf.mxu0
        %v1331 = vadd.f32 0.0, %v1330
        %v1332 = vpop.f32.mrf.mxu0
        %1333 = vdwg.mxu0
        %1336 = vrot.lane.b32.xlu0 %v1078, 8
        %v1337 = vpop.permute.xlu0 %1336
        %1338 = vrot.lane.b32.xlu0 %v1099, 8
        %v1339 = vpop.permute.xlu0 %1338
        %1344 = vrot.lane.b32.xlu0 %v1194, 16
        %v1345 = vpop.permute.xlu0 %1344
        %1346 = vrot.lane.b32.xlu0 %v1215, 16
        %v1347 = vpop.permute.xlu0 %1346
        %1352 = vrot.lane.b32.xlu0 %v1310, 24
        %v1353 = vpop.permute.xlu0 %1352
        %1354 = vrot.lane.b32.xlu0 %v1331, 24
        %v1355 = vpop.permute.xlu0 %1354
        %v1358 = vsel %vm871, %v962, %v1337
        %v1359 = vsel %vm871, %v983, %v1339
        %vm1360 = vcmask 130048
        %v1361 = vsel %vm1360, %v1358, %v1345
        %v1362 = vsel %vm1360, %v1359, %v1347
        %vm1363 = vcmask 195584
        %v1364 = vsel %vm1363, %v1361, %v1353
        %v1365 = vsel %vm1363, %v1362, %v1355
        %v1366 = vld [vmem:[%s733] sm:$0xff]
        %v1367 = vld [vmem:[%s733 + $0x8] sm:$0xff]
        %v1368 = vld [vmem:[%s733 + $0x10] sm:$0xff]
        %v1369 = vld [vmem:[%s733 + $0x18] sm:$0xff]
        %v1370 = vld [vmem:[%s736] sm:$0x1]
        %v1371 = vpack.c.bf16 %v1365, %v1364
        %v1372 = vpack.c.bf16 %v1367, %v1366
        %v1373 = vpack.c.bf16 %v1369, %v1368
        %v1375 = vperm.slane %v1370, 0
        %v1378 = vsel %vm773, %v1371, 0
        %1380 = vmatpush.bf16.msra.mxu0 0
        %1381 = vmatpush.bf16.msra.mxu0 0
        %1382 = vmatpush.bf16.msra.mxu0 0
        %1383 = vmatpush.bf16.msra.mxu0 0
        %1384 = vmatpush.bf16.msra.mxu0 0
        %1385 = vmatpush.bf16.msra.mxu0 0
        %1386 = vmatpush.bf16.msra.mxu0 %v1373
        %1387 = vmatpush.bf16.msra.mxu0 %v1372
        %1388 = vmatmul.bf16.gmra.mxu0 %v1378
        %v1389 = vpop.f32.mrf.mxu0
        %v1390 = vadd.f32 %v1375, %v1389
        %v1391 = vpop.f32.mrf.mxu0
        %v1392 = vadd.f32 %v1375, %v1391
        %1393 = vdwg.mxu0
        %v1394 = vadd.f32 %v769, %v1390
        %v1395 = vadd.f32 %v770, %v1392
        %v1396 = vld [vmem:[%s739] sm:$0x1]
        %v1397 = vld [vmem:[%s742] sm:$0x1]
        %v1398 = vsel %vm773, %v1394, 0.0
        %1399 = vadd.xlane.f32.xlu0 %v1398
        %v1400 = vpop.xlane.xlu0 %1399
        %v1401 = vsel %vm773, %v1395, 0.0
        %1402 = vadd.xlane.f32.xlu0 %v1401
        %v1403 = vpop.xlane.xlu0 %1402
        %v1404 = vmul.f32 %v1400, %v786
        %v1405 = vmul.f32 %v1403, %v786
        %v1406 = vsub.f32 %v1394, %v1404
        %v1407 = vsub.f32 %v1395, %v1405
        %v1408 = vmul.f32 %v1406, %v1406
        %v1409 = vmul.f32 %v1407, %v1407
        %v1410 = vsel %vm773, %v1408, 0.0
        %1411 = vadd.xlane.f32.xlu0 %v1410
        %v1412 = vpop.xlane.xlu0 %1411
        %v1413 = vsel %vm773, %v1409, 0.0
        %1414 = vadd.xlane.f32.xlu0 %v1413
        %v1415 = vpop.xlane.xlu0 %1414
        %v1416 = vmul.f32 %v1412, %v786
        %v1417 = vmul.f32 %v1415, %v786
        %v1418 = vadd.f32 %v1416, 1e-05
        %v1419 = vadd.f32 %v1417, 1e-05
        %v1420 = vrsqrt.pop %v1418
        %v1421 = vmul.f32 %v1420, %v1418
        %v1422 = vmul.f32 %v1421, %v1420
        %v1423 = vmul.f32 0.5, %v1422
        %v1424 = vsub.f32 1.5, %v1423
        %v1425 = vmul.f32 %v1420, %v1424
        %vm1426 = vweird.f32 %v1418
        %vm1427 = vweird.f32 %v1420
        %vm1428 = vmor %vm1426, %vm1427
        %v1429 = vsel %vm1428, %v1420, %v1425
        %v1430 = vrsqrt.pop %v1419
        %v1431 = vmul.f32 %v1430, %v1419
        %v1432 = vmul.f32 %v1431, %v1430
        %v1433 = vmul.f32 0.5, %v1432
        %v1434 = vsub.f32 1.5, %v1433
        %v1435 = vmul.f32 %v1430, %v1434
        %vm1436 = vweird.f32 %v1419
        %vm1437 = vweird.f32 %v1430
        %vm1438 = vmor %vm1436, %vm1437
        %v1439 = vsel %vm1438, %v1430, %v1435
        %v1440 = vmul.f32 %v1406, %v1429
        %v1441 = vmul.f32 %v1407, %v1439
        %v1443 = vperm.slane %v1396, 0
        %v1445 = vmul.f32 %v1440, %v1443
        %v1446 = vmul.f32 %v1441, %v1443
        %v1448 = vperm.slane %v1397, 0
        %v1450 = vadd.f32 %v1445, %v1448
        %v1451 = vadd.f32 %v1446, %v1448
        %v1452 = vld [vmem:[%s747] sm:$0xff]
        %v1453 = vld [vmem:[%s747 + $0x8] sm:$0xff]
        %v1454 = vld [vmem:[%s747 + $0x10] sm:$0xff]
        %v1455 = vld [vmem:[%s747 + $0x18] sm:$0xff]
        %v1456 = vld [vmem:[%s750] sm:$0x1]
        %v1457 = vpack.c.bf16 %v1451, %v1450
        %v1458 = vpack.c.bf16 %v1453, %v1452
        %v1459 = vpack.c.bf16 %v1455, %v1454
        %v1461 = vperm.slane %v1456, 0
        %v1464 = vsel %vm773, %v1457, 0
        %1466 = vmatpush.bf16.msra.mxu0 0
        %1467 = vmatpush.bf16.msra.mxu0 0
        %1468 = vmatpush.bf16.msra.mxu0 0
        %1469 = vmatpush.bf16.msra.mxu0 0
        %1470 = vmatpush.bf16.msra.mxu0 0
        %1471 = vmatpush.bf16.msra.mxu0 0
        %1472 = vmatpush.bf16.msra.mxu0 %v1459
        %1473 = vmatpush.bf16.msra.mxu0 %v1458
        %1474 = vmatmul.bf16.gmra.mxu0 %v1464
        %v1475 = vpop.f32.mrf.mxu0
        %v1476 = vadd.f32 %v1461, %v1475
        %v1477 = vpop.f32.mrf.mxu0
        %v1478 = vadd.f32 %v1461, %v1477
        %1479 = vdwg.mxu0
        %v1480 = vmul.f32 %v1476, 0.5
        %v1481 = vmul.f32 %v1478, 0.5
        %v1482 = vmul.f32 %v1476, 0.044715
        %v1483 = vmul.f32 %v1478, 0.044715
        %v1484 = vmul.f32 %v1482, %v1476
        %v1485 = vmul.f32 %v1483, %v1478
        %v1486 = vmul.f32 %v1484, %v1476
        %v1487 = vmul.f32 %v1485, %v1478
        %v1488 = vadd.f32 %v1476, %v1486
        %v1489 = vadd.f32 %v1478, %v1487
        %v1490 = vmul.f32 %v1488, 0.7978846
        %v1491 = vmul.f32 %v1489, 0.7978846
        %v1492 = vtanh.pop %v1490
        %v1493 = vtanh.pop %v1491
        %v1494 = vadd.f32 %v1492, 1.0
        %v1495 = vadd.f32 %v1493, 1.0
        %v1496 = vmul.f32 %v1480, %v1494
        %v1497 = vmul.f32 %v1481, %v1495
        %v1498 = vld [vmem:[%s755] sm:$0xff]
        %v1499 = vld [vmem:[%s755 + $0x8] sm:$0xff]
        %v1500 = vld [vmem:[%s755 + $0x10] sm:$0xff]
        %v1501 = vld [vmem:[%s755 + $0x18] sm:$0xff]
        %v1502 = vld [vmem:[%s755 + $0x20] sm:$0xff]
        %v1503 = vld [vmem:[%s755 + $0x28] sm:$0xff]
        %v1504 = vld [vmem:[%s755 + $0x30] sm:$0xff]
        %v1505 = vld [vmem:[%s755 + $0x38] sm:$0xff]
        %v1506 = vld [vmem:[%s755 + $0x40] sm:$0xff]
        %v1507 = vld [vmem:[%s755 + $0x48] sm:$0xff]
        %v1508 = vld [vmem:[%s755 + $0x50] sm:$0xff]
        %v1509 = vld [vmem:[%s755 + $0x58] sm:$0xff]
        %v1510 = vld [vmem:[%s755 + $0x60] sm:$0xff]
        %v1511 = vld [vmem:[%s755 + $0x68] sm:$0xff]
        %v1512 = vld [vmem:[%s755 + $0x70] sm:$0xff]
        %v1513 = vld [vmem:[%s755 + $0x78] sm:$0xff]
        %v1514 = vld [vmem:[%s758] sm:$0x1]
        %v1515 = vpack.c.bf16 %v1497, %v1496
        %v1516 = vpack.c.bf16 %v1499, %v1498
        %v1517 = vpack.c.bf16 %v1501, %v1500
        %v1518 = vpack.c.bf16 %v1503, %v1502
        %v1519 = vpack.c.bf16 %v1505, %v1504
        %v1520 = vpack.c.bf16 %v1507, %v1506
        %v1521 = vpack.c.bf16 %v1509, %v1508
        %v1522 = vpack.c.bf16 %v1511, %v1510
        %v1523 = vpack.c.bf16 %v1513, %v1512
        %v1525 = vperm.slane %v1514, 0
        %1527 = vmatpush.bf16.msra.mxu0 %v1523
        %1528 = vmatpush.bf16.msra.mxu0 %v1522
        %1529 = vmatpush.bf16.msra.mxu0 %v1521
        %1530 = vmatpush.bf16.msra.mxu0 %v1520
        %1531 = vmatpush.bf16.msra.mxu0 %v1519
        %1532 = vmatpush.bf16.msra.mxu0 %v1518
        %1533 = vmatpush.bf16.msra.mxu0 %v1517
        %1534 = vmatpush.bf16.msra.mxu0 %v1516
        %1535 = vmatmul.bf16.gmra.mxu0 %v1515
        %v1536 = vpop.f32.mrf.mxu0
        %v1537 = vadd.f32 %v1525, %v1536
        %v1538 = vpop.f32.mrf.mxu0
        %v1539 = vadd.f32 %v1525, %v1538
        %1540 = vdwg.mxu0
        %v1541 = vadd.f32 %v1394, %v1537
        %v1542 = vadd.f32 %v1395, %v1539
        %1543 = vst.msk [vmem:[#allocation2] sm:$0xff] %vm773, %v1541
        %1544 = vst.msk [vmem:[#allocation2 + $0x8] sm:$0xff] %vm773, %v1542
        %p1545 = scmp.eq.s32.totalorder %s32, 1
        // Predicated region
        $region97: #{tgpt2_forward.1} parent=91 // pred_check
          %p1546 = pneg %p1545
        $region98: #{tgpt2_forward.1} parent=91 // pred_check_branch
          %1548 = sbr.rel (%p1546) target = $region100
        $region99: #{tgpt2_forward.1} parent=91 // pred_region
          %v1549 = vld [vmem:[%s13] sm:$0x1]
          %v1550 = vld [vmem:[%s14] sm:$0x1]
          %v1551 = vsel %vm773, %v1541, 0.0
          %1552 = vadd.xlane.f32.xlu0 %v1551
          %v1553 = vpop.xlane.xlu0 %1552
          %v1554 = vsel %vm773, %v1542, 0.0
          %1555 = vadd.xlane.f32.xlu0 %v1554
          %v1556 = vpop.xlane.xlu0 %1555
          %v1557 = vmul.f32 %v1553, %v786
          %v1558 = vmul.f32 %v1556, %v786
          %v1559 = vsub.f32 %v1541, %v1557
          %v1560 = vsub.f32 %v1542, %v1558
          %v1561 = vmul.f32 %v1559, %v1559
          %v1562 = vmul.f32 %v1560, %v1560
          %v1563 = vsel %vm773, %v1561, 0.0
          %1564 = vadd.xlane.f32.xlu0 %v1563
          %v1565 = vpop.xlane.xlu0 %1564
          %v1566 = vsel %vm773, %v1562, 0.0
          %1567 = vadd.xlane.f32.xlu0 %v1566
          %v1568 = vpop.xlane.xlu0 %1567
          %v1569 = vmul.f32 %v1565, %v786
          %v1570 = vmul.f32 %v1568, %v786
          %v1571 = vadd.f32 %v1569, 1e-05
          %v1572 = vadd.f32 %v1570, 1e-05
          %v1573 = vrsqrt.pop %v1571
          %v1574 = vmul.f32 %v1573, %v1571
          %v1575 = vmul.f32 %v1574, %v1573
          %v1576 = vmul.f32 0.5, %v1575
          %v1577 = vsub.f32 1.5, %v1576
          %v1578 = vmul.f32 %v1573, %v1577
          %vm1579 = vweird.f32 %v1571
          %vm1580 = vweird.f32 %v1573
          %vm1581 = vmor %vm1579, %vm1580
          %v1582 = vsel %vm1581, %v1573, %v1578
          %v1583 = vrsqrt.pop %v1572
          %v1584 = vmul.f32 %v1583, %v1572
          %v1585 = vmul.f32 %v1584, %v1583
          %v1586 = vmul.f32 0.5, %v1585
          %v1587 = vsub.f32 1.5, %v1586
          %v1588 = vmul.f32 %v1583, %v1587
          %vm1589 = vweird.f32 %v1572
          %vm1590 = vweird.f32 %v1583
          %vm1591 = vmor %vm1589, %vm1590
          %v1592 = vsel %vm1591, %v1583, %v1588
          %v1593 = vmul.f32 %v1559, %v1582
          %v1594 = vmul.f32 %v1560, %v1592
          %v1596 = vperm.slane %v1549, 0
          %v1598 = vmul.f32 %v1593, %v1596
          %v1599 = vmul.f32 %v1594, %v1596
          %v1601 = vperm.slane %v1550, 0
          %v1603 = vadd.f32 %v1598, %v1601
          %v1604 = vadd.f32 %v1599, %v1601
          %v1605 = vpack.c.bf16 %v1604, %v1603
          %v1606 = vld [vmem:[%s15] sm:$0xff]
          %v1607 = vld [vmem:[%s15 + $0x8] sm:$0xff]
          %v1608 = vld [vmem:[%s15 + $0x10] sm:$0xff]
          %v1609 = vld [vmem:[%s15 + $0x18] sm:$0xff]
          %v1610 = vld [vmem:[%s15 + $0x20] sm:$0xff]
          %v1611 = vld [vmem:[%s15 + $0x28] sm:$0xff]
          %v1612 = vld [vmem:[%s15 + $0x30] sm:$0xff]
          %v1613 = vld [vmem:[%s15 + $0x38] sm:$0xff]
          %v1614 = vld [vmem:[%s15 + $0x40] sm:$0xff]
          %v1615 = vld [vmem:[%s15 + $0x48] sm:$0xff]
          %v1616 = vld [vmem:[%s15 + $0x50] sm:$0xff]
          %v1617 = vld [vmem:[%s15 + $0x58] sm:$0xff]
          %v1618 = vld [vmem:[%s15 + $0x60] sm:$0xff]
          %v1619 = vld [vmem:[%s15 + $0x68] sm:$0xff]
          %v1620 = vld [vmem:[%s15 + $0x70] sm:$0xff]
          %v1621 = vld [vmem:[%s15 + $0x78] sm:$0xff]
          %v1622 = vpack.c.bf16 %v1607, %v1606
          %v1623 = vpack.c.bf16 %v1609, %v1608
          %v1624 = vpack.c.bf16 %v1611, %v1610
          %v1625 = vpack.c.bf16 %v1613, %v1612
          %v1626 = vpack.c.bf16 %v1615, %v1614
          %v1627 = vpack.c.bf16 %v1617, %v1616
          %v1628 = vpack.c.bf16 %v1619, %v1618
          %v1629 = vpack.c.bf16 %v1621, %v1620
          %v1631 = vsel %vm773, %v1605, 0
          %v1634 = vsel %vm773, %v1622, 0
          %v1637 = vsel %vm773, %v1623, 0
          %v1640 = vsel %vm773, %v1624, 0
          %v1643 = vsel %vm773, %v1625, 0
          %v1646 = vsel %vm773, %v1626, 0
          %v1649 = vsel %vm773, %v1627, 0
          %v1652 = vsel %vm773, %v1628, 0
          %v1655 = vsel %vm773, %v1629, 0
          %1657 = vmatpush.bf16.xpose.msra.mxu0 %v1655
          %1658 = vmatpush.bf16.xpose.msra.mxu0 %v1652
          %1659 = vmatpush.bf16.xpose.msra.mxu0 %v1649
          %1660 = vmatpush.bf16.xpose.msra.mxu0 %v1646
          %1661 = vmatpush.bf16.xpose.msra.mxu0 %v1643
          %1662 = vmatpush.bf16.xpose.msra.mxu0 %v1640
          %1663 = vmatpush.bf16.xpose.msra.mxu0 %v1637
          %1664 = vmatpush.bf16.xpose.msra.mxu0 %v1634
          %1665 = vmatmul.bf16.gmra.mxu0 %v1631
          %v1666 = vpop.f32.mrf.mxu0
          %v1667 = vadd.f32 0.0, %v1666
          %v1668 = vpop.f32.mrf.mxu0
          %v1669 = vadd.f32 0.0, %v1668
          %1670 = vdwg.mxu0
          %1671 = vst [vmem:[%s18] sm:$0xff] %v1667
          %1672 = vst [vmem:[%s18 + $0x8] sm:$0xff] %v1669
          %v1673 = vld [vmem:[%s17] sm:$0xff]
          %v1674 = vld [vmem:[%s17 + $0x8] sm:$0xff]
          %v1675 = vlaneseq
          %v1676 = vand.u32 %v1675, 127
          %vm1677 = vcmp.lt.s32.totalorder %v1676, 64
          %v1678 = vsel %vm1677, %v1667, -1e+30
          %v1679 = vsel %vm1677, %v1669, -1e+30
          %1680 = vmax.xlane.f32.xlu0 %v1678
          %v1681 = vpop.xlane.xlu0 %1680
          %1682 = vmax.xlane.f32.xlu0 %v1679
          %v1683 = vpop.xlane.xlu0 %1682
          %v1684 = vsub.f32 %v1678, %v1681
          %v1685 = vsub.f32 %v1679, %v1683
          %v1686 = vmul.f32 %v1684, 1.442695
          %v1687 = vpow.pop %v1686
          %v1688 = vmul.f32 %v1685, 1.442695
          %v1689 = vpow.pop %v1688
          %1690 = vadd.xlane.f32.xlu0 %v1687
          %v1691 = vpop.xlane.xlu0 %1690
          %1692 = vadd.xlane.f32.xlu0 %v1689
          %v1693 = vpop.xlane.xlu0 %1692
          %v1694 = vlog2.pop %v1691
          %v1695 = vmul.f32 %v1694, 0.6931472
          %v1696 = vlog2.pop %v1693
          %v1697 = vmul.f32 %v1696, 0.6931472
          %v1698 = vadd.f32 %v1695, %v1681
          %v1699 = vadd.f32 %v1697, %v1683
          %1700 = vset.pattern.permute.xlu0 0
          %1701 = vperm.xlu0 %1700, %v1673
          %v1702 = vpop.permute.xlu0 %1701
          %1703 = vset.pattern.permute.xlu0 0
          %1704 = vperm.xlu0 %1703, %v1674
          %v1705 = vpop.permute.xlu0 %1704
          %vm1706 = vcmp.eq.s32.totalorder %v1676, %v1702
          %vm1707 = vcmp.eq.s32.totalorder %v1676, %v1705
          %v1708 = vsel %vm1706, %v1678, 0.0
          %v1709 = vsel %vm1707, %v1679, 0.0
          %1710 = vadd.xlane.f32.xlu0 %v1708
          %v1711 = vpop.xlane.xlu0 %1710
          %1712 = vadd.xlane.f32.xlu0 %v1709
          %v1713 = vpop.xlane.xlu0 %1712
          %vm1714 = vcmp.ge.s32.totalorder %v1673, 0
          %vm1715 = vcmp.ge.s32.totalorder %v1674, 0
          %v1716 = vsel %vm1714, 1, 0
          %v1717 = vsel %vm1715, 1, 0
          %v1718 = vcvt.s32.f32 %v1716
          %v1719 = vcvt.s32.f32 %v1717
          %v1720 = vsub.f32 %v1698, %v1711
          %v1721 = vsub.f32 %v1699, %v1713
          %v1722 = vmul.f32 %v1720, %v1718
          %v1723 = vmul.f32 %v1721, %v1719
          %vm1724 = vcmask 7168
          %v1725 = vsel %vm1724, %v1722, 0.0
          %v1726 = vsel %vm1724, %v1723, 0.0
          %v1727 = vadd.f32 %v1725, %v1726
          %1728 = vadd.xlane.f32.xlu0 %v1727
          %v1729 = vpop.xlane.xlu0 %1728
          %v1730 = vrot.slane %v1729, 4
          %v1731 = vadd.f32 %v1729, %v1730
          %v1732 = vrot.slane %v1731, 2
          %v1733 = vadd.f32 %v1731, %v1732
          %v1734 = vrot.slane %v1733, 1
          %v1735 = vadd.f32 %v1733, %v1734
          %s1736 = vtos %v1735
          %v1737 = vstv %s1736
          %v1738 = vmul.f32 %v1737, 0.071428575
          %vm1739 = vcmask 0
          %1740 = vst.msk [vmem:[#allocation3] sm:$0x1] %vm1739, %v1738
        $region100: #{tgpt2_forward.1} parent=91 // pred_fallthru
          _
        // Predicated region
        $region101: #{tgpt2_forward.1} parent=91 // pred_check
          %p1741 = pneg %p483
        $region102: #{tgpt2_forward.1} parent=91 // pred_check_branch
          %1743 = sbr.rel (%p1741) target = $region104
        $region103: #{tgpt2_forward.1} parent=91 // pred_region
          _
        $region104: #{tgpt2_forward.1} parent=91 // pred_fallthru
          _
        // Predicated region
        $region105: #{tgpt2_forward.1} parent=91 // pred_check
          %p1744 = pneg %p504
        $region106: #{tgpt2_forward.1} parent=91 // pred_check_branch
          %1746 = sbr.rel (%p1744) target = $region108
        $region107: #{tgpt2_forward.1} parent=91 // pred_region
          %1748 = vsyncadd [#allocation4], 0
          %s1750 = sshll.u32 [#allocation3], 4
          %s1751 = int_to_ptr.vmem [resolvable:$true] %s1750
          %s1752 = sshll.u32 %s19, 4
          %s1753 = int_to_ptr.hbm [resolvable:$true] %s1752
          %1755 = dma.vmem_to_hbm [thread:$0]  %s1751, 16, %s1753, [#allocation4]
        $region108: #{tgpt2_forward.1} parent=91 // pred_fallthru
          _
        // Predicated region
        $region109: #{tgpt2_forward.1} parent=91 // pred_check
          %p1756 = pneg %p483
        $region110: #{tgpt2_forward.1} parent=91 // pred_check_branch
          %1758 = sbr.rel (%p1756) target = $region112
        $region111: #{tgpt2_forward.1} parent=91 // pred_region
          _
        $region112: #{tgpt2_forward.1} parent=91 // pred_fallthru
          _
        // Predicated region
        $region113: #{tgpt2_forward.1} parent=91 // pred_check
          %p1759 = pneg %p504
        $region114: #{tgpt2_forward.1} parent=91 // pred_check_branch
          %1761 = sbr.rel (%p1759) target = $region116
        $region115: #{tgpt2_forward.1} parent=91 // pred_region
          %1763 = dma.done [#allocation4], 16
        $region116: #{tgpt2_forward.1} parent=91 // pred_fallthru
          _
      $region92: #{tgpt2_forward.1} parent=5 // pred_fallthru
        _
      %p1764 = scmp.le.s32.totalorder 2, %s27
      // Predicated region
      $region117: #{tgpt2_forward.1} parent=5 // pred_check
        %p1765 = pneg %p1764
      $region118: #{tgpt2_forward.1} parent=5 // pred_check_branch
        %1767 = sbr.rel (%p1765) target = $region120
      $region119: #{tgpt2_forward.1} parent=5 // pred_region
        %s1768 = ssub.s32 %s27, 2
      $region120: #{tgpt2_forward.1} parent=5 // pred_fallthru
        _
    $region6: #{tgpt2_forward.1} parent=1 // loop_footer
      %s31 = sadd.s32 1, %s27
    $region7: #{tgpt2_forward.1} parent=1 // loop_footer_branch
      %26 = sbr.rel target = $region3
    $region8: #{tgpt2_forward.1} parent=1 // loop_exit
      _
    %1769 = vsyncpa [#allocation4], 1
    %s1770 = scalar_lea.sflag [#allocation4], 1
    %1771 = vsyncpa %s1770, 1

</llo_original>
